<compile_context>
chip_gen: v7x
topology: tpu7x:2x2x1
jax: 0.10.0
libtpu: 0.0.40
codegen_flags: <defaults>
</compile_context>

<pallas_src>
import jax
import jax.numpy as jnp
from jax import lax
from jax.experimental import pallas as pl
from jax.experimental.pallas import tpu as pltpu

O_PAD = 128        # lane-dense padded output-channel count (do NOT pad past 128)
ROW_BLOCK = 512    # max output rows per grid step (multiple of 16)


def _make_conv3x3_kernel(wp, rb, c, n_row_blocks):
    """Kernel closed over padded row stride (wp), row-block size (rb), channels (c)."""
    tap_offsets = tuple(di * wp + dj for di in range(3) for dj in range(3))
    win_rows = rb + 2 * wp + 2        # rows covering all 9 taps of one row block

    def kernel(x_ref, w_ref, b_ref, o_ref, patch_ref):
        # x_ref     : (1, M_in_pad, C) bf16  flattened padded image (resident per n)
        # w_ref     : (9*C, 128)       bf16  im2col weights (resident)
        # b_ref     : (1, 128)         f32   zero-padded bias row (resident)
        # o_ref     : (1, RB, 128)     bf16  output row block
        # patch_ref : (RB, 9*C)        bf16  in-VMEM im2col scratch
        if n_row_blocks == 1:
            row0 = 0                                          # fully static path
        else:
            row0 = pl.multiple_of(pl.program_id(1) * rb, 16)  # bf16-tile-aligned start
        # One aligned (or static) load of the halo'd window; the 9 unaligned tap
        # shifts below are static slices of this value (shift paid once per tap).
        win = x_ref[0, pl.ds(row0, win_rows), :]              # (win_rows, C)
        for t, ofs in enumerate(tap_offsets):                 # static unroll, 9 taps
            patch_ref[:, t * c:(t + 1) * c] = win[ofs:ofs + rb, :]
        # Single fused matmul, K = 9*C, f32 accumulation inside the MXU.
        acc = jnp.dot(patch_ref[...], w_ref[...],
                      preferred_element_type=jnp.float32)
        o_ref[0] = (acc + b_ref[...]).astype(o_ref.dtype)     # bf16 lane-dense store

    return kernel


def offset_generator_forward(x_nchw, weight, bias):
    """Conv2d(C -> 18, kernel 3x3, stride 1, padding 1), PyTorch NCHW semantics."""
    N, C, H, W = x_nchw.shape
    O, Cw, KH, KW = weight.shape
    assert (KH, KW) == (3, 3) and Cw == C

    Hp, Wp = H + 2, W + 2
    M_out = H * Wp                                     # output rows incl. junk columns
    RB = min(ROW_BLOCK, ((M_out + 15) // 16) * 16)     # rows per grid step
    M_pad = ((M_out + RB - 1) // RB) * RB              # padded output rows
    R = M_pad // RB                                    # row blocks per image
    M_in_pad = M_pad + 2 * Wp + 2                      # padded input rows (covers all taps)

    # ---- layout prep only (bf16, ~1x input traffic; no HBM-side im2col) ----
    x = x_nchw.astype(jnp.bfloat16)
    x = jnp.transpose(x, (0, 2, 3, 1))                        # NHWC
    x = jnp.pad(x, ((0, 0), (1, 1), (1, 1), (0, 0)))          # spatial pad = 1
    x = x.reshape(N, Hp * Wp, C)
    x = jnp.pad(x, ((0, 0), (0, M_in_pad - Hp * Wp), (0, 0))) # (N, M_in_pad, C)

    # weight (O,C,3,3) -> (3,3,C,O) -> (9*C, O) -> pad O to 128, cast bf16
    w = jnp.transpose(weight, (2, 3, 1, 0)).reshape(KH * KW * C, O)
    w = jnp.pad(w, ((0, 0), (0, O_PAD - O))).astype(jnp.bfloat16)
    b = jnp.pad(bias, (0, O_PAD - O)).reshape(1, O_PAD).astype(jnp.float32)

    flops = 2 * N * H * W * KH * KW * C * O                   # useful work only
    bytes_accessed = (x.size * 2 + w.size * 2 + b.size * 4
                      + N * M_pad * O_PAD * 2)                # bf16 writeback

    out = pl.pallas_call(
        _make_conv3x3_kernel(Wp, RB, C, R),
        out_shape=jax.ShapeDtypeStruct((N, M_pad, O_PAD), jnp.bfloat16),
        grid_spec=pltpu.PrefetchScalarGridSpec(
            num_scalar_prefetch=0,
            grid=(N, R),
            in_specs=[
                pl.BlockSpec((1, M_in_pad, C), lambda n, r: (n, 0, 0)),    # image, resident per n
                pl.BlockSpec((KH * KW * C, O_PAD), lambda n, r: (0, 0)),   # weights, resident
                pl.BlockSpec((1, O_PAD), lambda n, r: (0, 0)),             # bias row, resident
            ],
            out_specs=pl.BlockSpec((1, RB, O_PAD), lambda n, r: (n, r, 0)),
            scratch_shapes=[pltpu.VMEM((RB, KH * KW * C), jnp.bfloat16)],  # im2col patch
        ),
        compiler_params=pltpu.CompilerParams(
            dimension_semantics=("parallel", "parallel"),
            vmem_limit_bytes=64 * 1024 * 1024),
        cost_estimate=pl.CostEstimate(
            flops=flops, transcendentals=0, bytes_accessed=bytes_accessed),
    )(x, w, b)

    # drop junk rows/columns + padded channels, back to NCHW f32
    out = out[:, :M_out, :O].astype(jnp.float32)
    out = out.reshape(N, H, Wp, O)[:, :, :W, :]
    return jnp.transpose(out, (0, 3, 1, 2))


if __name__ == "__main__":
    N, C, H, W = 2, 4, 16, 16
    O, KH, KW = 18, 3, 3

    key = jax.random.PRNGKey(0)
    kx, kw, kb = jax.random.split(key, 3)

    x = jax.random.normal(kx, (N, C, H, W), dtype=jnp.float32)

    # PyTorch Conv2d default init scale: U(-1/sqrt(fan_in), +1/sqrt(fan_in))
    fan_in = C * KH * KW
    bound = 1.0 / (fan_in ** 0.5)
    weight = jax.random.uniform(kw, (O, C, KH, KW), jnp.float32, -bound, bound)
    bias = jax.random.uniform(kb, (O,), jnp.float32, -bound, bound)

    y = offset_generator_forward(x, weight, bias)
    y = jax.block_until_ready(y)
    assert y.shape == (N, O, H, W)

    # Reference on bf16-rounded inputs (kernel multiplies in bf16, accumulates in
    # f32, stores bf16 -> tolerance sized for bf16 output rounding).
    x_q = x.astype(jnp.bfloat16).astype(jnp.float32)
    w_q = weight.astype(jnp.bfloat16).astype(jnp.float32)
    ref = lax.conv_general_dilated(
        x_q, w_q, window_strides=(1, 1), padding=((1, 1), (1, 1)),
        dimension_numbers=("NCHW", "OIHW", "NCHW"),
        precision=lax.Precision.HIGHEST) + bias[None, :, None, None]
    err = float(jnp.max(jnp.abs(y - ref)))
    assert jnp.allclose(y, ref, atol=2e-2, rtol=2e-2), err

    print("KERNEL_OK")
</pallas_src>

<mosaic_0001>
module attributes {stable_mosaic.version = 11 : i64} {
  func.func @kernel(%arg0: i32, %arg1: i32, %arg2: memref<1x326x4xbf16, #tpu.memory_space<vmem>>, %arg3: memref<36x128xbf16, #tpu.memory_space<vmem>>, %arg4: memref<1x128xf32, #tpu.memory_space<vmem>>, %arg5: memref<1x288x128xbf16, #tpu.memory_space<vmem>>, %arg6: memref<288x36xbf16, #tpu.memory_space<vmem>>) attributes {dimension_semantics = [#tpu.dimension_semantics<parallel>, #tpu.dimension_semantics<parallel>], iteration_bounds = array<i64: 2, 1>, scalar_prefetch = 0 : i64, scratch_operands = 1 : i64, tpu.core_type = #tpu.core_type<tc>, window_params = [{transform_indices = @transform_0, window_bounds = array<i64: 1, 326, 4>}, {pipeline_mode = #tpu.pipeline_mode<synchronous>, transform_indices = @transform_1, window_bounds = array<i64: 36, 128>}, {pipeline_mode = #tpu.pipeline_mode<synchronous>, transform_indices = @transform_2, window_bounds = array<i64: 1, 128>}, {transform_indices = @transform_3, window_bounds = array<i64: 1, 288, 128>}]} {
    %c0 = arith.constant 0 : index
    %c0_0 = arith.constant 0 : index
    %c0_1 = arith.constant 0 : index
    %0 = vector.load %arg2[%c0, %c0_0, %c0_1] : memref<1x326x4xbf16, #tpu.memory_space<vmem>>, vector<1x326x4xbf16>
    %1 = vector.shape_cast %0 : vector<1x326x4xbf16> to vector<326x4xbf16>
    %2 = vector.extract_strided_slice %1 {offsets = [0, 0], sizes = [288, 4], strides = [1, 1]} : vector<326x4xbf16> to vector<288x4xbf16>
    %c0_2 = arith.constant 0 : index
    %c0_3 = arith.constant 0 : index
    %3 = vector.load %arg6[%c0_2, %c0_3] : memref<288x36xbf16, #tpu.memory_space<vmem>>, vector<288x4xbf16>
    tpu.vector_store %arg6[%c0_2, %c0_3], %2 {strides = array<i32>} : memref<288x36xbf16, #tpu.memory_space<vmem>>, vector<288x4xbf16>,
    %4 = vector.extract_strided_slice %1 {offsets = [1, 0], sizes = [288, 4], strides = [1, 1]} : vector<326x4xbf16> to vector<288x4xbf16>
    %c0_4 = arith.constant 0 : index
    %c4 = arith.constant 4 : index
    %5 = vector.load %arg6[%c0_4, %c4] : memref<288x36xbf16, #tpu.memory_space<vmem>>, vector<288x4xbf16>
    tpu.vector_store %arg6[%c0_4, %c4], %4 {strides = array<i32>} : memref<288x36xbf16, #tpu.memory_space<vmem>>, vector<288x4xbf16>,
    %6 = vector.extract_strided_slice %1 {offsets = [2, 0], sizes = [288, 4], strides = [1, 1]} : vector<326x4xbf16> to vector<288x4xbf16>
    %c0_5 = arith.constant 0 : index
    %c8 = arith.constant 8 : index
    %7 = vector.load %arg6[%c0_5, %c8] : memref<288x36xbf16, #tpu.memory_space<vmem>>, vector<288x4xbf16>
    tpu.vector_store %arg6[%c0_5, %c8], %6 {strides = array<i32>} : memref<288x36xbf16, #tpu.memory_space<vmem>>, vector<288x4xbf16>,
    %8 = vector.extract_strided_slice %1 {offsets = [18, 0], sizes = [288, 4], strides = [1, 1]} : vector<326x4xbf16> to vector<288x4xbf16>
    %c0_6 = arith.constant 0 : index
    %c12 = arith.constant 12 : index
    %9 = vector.load %arg6[%c0_6, %c12] : memref<288x36xbf16, #tpu.memory_space<vmem>>, vector<288x4xbf16>
    tpu.vector_store %arg6[%c0_6, %c12], %8 {strides = array<i32>} : memref<288x36xbf16, #tpu.memory_space<vmem>>, vector<288x4xbf16>,
    %10 = vector.extract_strided_slice %1 {offsets = [19, 0], sizes = [288, 4], strides = [1, 1]} : vector<326x4xbf16> to vector<288x4xbf16>
    %c0_7 = arith.constant 0 : index
    %c16 = arith.constant 16 : index
    %11 = vector.load %arg6[%c0_7, %c16] : memref<288x36xbf16, #tpu.memory_space<vmem>>, vector<288x4xbf16>
    tpu.vector_store %arg6[%c0_7, %c16], %10 {strides = array<i32>} : memref<288x36xbf16, #tpu.memory_space<vmem>>, vector<288x4xbf16>,
    %12 = vector.extract_strided_slice %1 {offsets = [20, 0], sizes = [288, 4], strides = [1, 1]} : vector<326x4xbf16> to vector<288x4xbf16>
    %c0_8 = arith.constant 0 : index
    %c20 = arith.constant 20 : index
    %13 = vector.load %arg6[%c0_8, %c20] : memref<288x36xbf16, #tpu.memory_space<vmem>>, vector<288x4xbf16>
    tpu.vector_store %arg6[%c0_8, %c20], %12 {strides = array<i32>} : memref<288x36xbf16, #tpu.memory_space<vmem>>, vector<288x4xbf16>,
    %14 = vector.extract_strided_slice %1 {offsets = [36, 0], sizes = [288, 4], strides = [1, 1]} : vector<326x4xbf16> to vector<288x4xbf16>
    %c0_9 = arith.constant 0 : index
    %c24 = arith.constant 24 : index
    %15 = vector.load %arg6[%c0_9, %c24] : memref<288x36xbf16, #tpu.memory_space<vmem>>, vector<288x4xbf16>
    tpu.vector_store %arg6[%c0_9, %c24], %14 {strides = array<i32>} : memref<288x36xbf16, #tpu.memory_space<vmem>>, vector<288x4xbf16>,
    %16 = vector.extract_strided_slice %1 {offsets = [37, 0], sizes = [288, 4], strides = [1, 1]} : vector<326x4xbf16> to vector<288x4xbf16>
    %c0_10 = arith.constant 0 : index
    %c28 = arith.constant 28 : index
    %17 = vector.load %arg6[%c0_10, %c28] : memref<288x36xbf16, #tpu.memory_space<vmem>>, vector<288x4xbf16>
    tpu.vector_store %arg6[%c0_10, %c28], %16 {strides = array<i32>} : memref<288x36xbf16, #tpu.memory_space<vmem>>, vector<288x4xbf16>,
    %18 = vector.extract_strided_slice %1 {offsets = [38, 0], sizes = [288, 4], strides = [1, 1]} : vector<326x4xbf16> to vector<288x4xbf16>
    %c0_11 = arith.constant 0 : index
    %c32 = arith.constant 32 : index
    %19 = vector.load %arg6[%c0_11, %c32] : memref<288x36xbf16, #tpu.memory_space<vmem>>, vector<288x4xbf16>
    tpu.vector_store %arg6[%c0_11, %c32], %18 {strides = array<i32>} : memref<288x36xbf16, #tpu.memory_space<vmem>>, vector<288x4xbf16>,
    %c0_12 = arith.constant 0 : index
    %c0_13 = arith.constant 0 : index
    %20 = vector.load %arg6[%c0_12, %c0_13] : memref<288x36xbf16, #tpu.memory_space<vmem>>, vector<288x36xbf16>
    %c0_14 = arith.constant 0 : index
    %c0_15 = arith.constant 0 : index
    %21 = vector.load %arg3[%c0_14, %c0_15] : memref<36x128xbf16, #tpu.memory_space<vmem>>, vector<36x128xbf16>
    %cst = arith.constant dense<0.000000e+00> : vector<288x128xf32>
    %22 = tpu.matmul %20, %21, %cst {dimension_numbers = #tpu.dot_dimension_numbers<[1], [0], [0], [1], [0, 0, 1, 1], [], []>} : vector<288x36xbf16>, vector<36x128xbf16>, vector<288x128xf32> -> vector<288x128xf32>
    %c0_16 = arith.constant 0 : index
    %c0_17 = arith.constant 0 : index
    %23 = vector.load %arg4[%c0_16, %c0_17] : memref<1x128xf32, #tpu.memory_space<vmem>>, vector<1x128xf32>
    %24 = vector.broadcast %23 : vector<1x128xf32> to vector<288x128xf32>
    %25 = arith.addf %22, %24 : vector<288x128xf32>
    %26 = arith.truncf %25 : vector<288x128xf32> to vector<288x128xbf16>
    %c0_18 = arith.constant 0 : index
    %c0_19 = arith.constant 0 : index
    %c0_20 = arith.constant 0 : index
    %27 = vector.load %arg5[%c0_18, %c0_19, %c0_20] : memref<1x288x128xbf16, #tpu.memory_space<vmem>>, vector<1x288x128xbf16>
    %28 = vector.shape_cast %27 : vector<1x288x128xbf16> to vector<288x128xbf16>
    %29 = vector.shape_cast %26 : vector<288x128xbf16> to vector<1x288x128xbf16>
    tpu.vector_store %arg5[%c0_18, %c0_19, %c0_20], %29 {strides = array<i32>} : memref<1x288x128xbf16, #tpu.memory_space<vmem>>, vector<1x288x128xbf16>,
    return
  }
  func.func @transform_0(%arg0: i32, %arg1: i32) -> (i32, i32, i32) {
    %c0_i32 = arith.constant 0 : i32
    %c0_i32_0 = arith.constant 0 : i32
    %c0_i32_1 = arith.constant 0 : i32
    return %arg0, %c0_i32, %c0_i32_0 : i32, i32, i32
  }
  func.func @transform_1(%arg0: i32, %arg1: i32) -> (i32, i32) {
    %c0_i32 = arith.constant 0 : i32
    %c0_i32_0 = arith.constant 0 : i32
    %c0_i32_1 = arith.constant 0 : i32
    return %c0_i32, %c0_i32_0 : i32, i32
  }
  func.func @transform_2(%arg0: i32, %arg1: i32) -> (i32, i32) {
    %c0_i32 = arith.constant 0 : i32
    %c0_i32_0 = arith.constant 0 : i32
    %c0_i32_1 = arith.constant 0 : i32
    return %c0_i32, %c0_i32_0 : i32, i32
  }
  func.func @transform_3(%arg0: i32, %arg1: i32) -> (i32, i32, i32) {
    %c0_i32 = arith.constant 0 : i32
    %c0_i32_0 = arith.constant 0 : i32
    return %arg0, %arg1, %c0_i32 : i32, i32, i32
  }
}

</mosaic_0001>

<llo_original>
// kernel: tpu_custom_call.1
$region0: #{tpu_custom_call.1}
  #allocation0 [shape = 'u32[]', space=smem, size = 0x4, offset = 0x4, fixed_abs, tag = 'smem constant byte address 0x4 - core index']
  #allocation1 [shape = 'u32[144,128]{1,0:T(1,128)}', space=vmem, size = 0x12000, scoped, tag = 'internal scratch']
  #allocation2 [shape = 'bf16[288,36]{1,0:T(16,128)(2,1)}', space=vmem, size = 0x12000, scoped, tag = 'scratch operand']
  %s0 = inlined_call_operand.hbm [shape: bf16[2,326,4], index: 0, kind: input, shape index: {}]
  %s1 = inlined_call_operand.hbm [shape: bf16[36,128], index: 1, kind: input, shape index: {}]
  %s2 = inlined_call_operand.hbm [shape: f32[1,128], index: 2, kind: input, shape index: {}]
  %s3 = inlined_call_operand.hbm [shape: bf16[2,288,128], index: 3, kind: output, shape index: {}]
  %s4 = sld [smem:[#allocation0]]
  $region57: #{tpu_custom_call.1} parent=0
    _
  %s6 = ssub.s32 1, %s4
  %s7 = scalar_select 0, %s6, %s4
  $region1: #{tpu_custom_call.1} parent=0
    #allocation3 [shape = 'u8[167936]{0}', space=vmem, size = 0x29000, scoped, tag = 'input window, operand 0']
    #allocation4 [shape = 's32[2]{0}', space=sflag, size = 0x8, scoped, tag = 'scoped memory for tpu_custom_call.1']
    #allocation5 [shape = 's32[2]{0}', space=sflag, size = 0x8, scoped, tag = 'scoped memory for tpu_custom_call.1']
    #allocation6 [shape = 'u8[10240]{0}', space=vmem, size = 0x2800, scoped, tag = 'input window, operand 1, single buffered']
    #allocation7 [shape = 's32[1]{0}', space=sflag, size = 0x4, scoped, tag = 'scoped memory for tpu_custom_call.1']
    #allocation8 [shape = 'u8[512]{0}', space=vmem, size = 0x400, scoped, tag = 'input window, operand 2, single buffered']
    #allocation9 [shape = 'u8[147456]{0}', space=vmem, size = 0x24000, scoped, tag = 'output window, operand 0']
    %8 = vsyncpa [#allocation4], 0
    %s9 = scalar_lea.sflag [#allocation4], 1
    %10 = vsyncpa %s9, 0
    %11 = vsyncpa [#allocation7], 0
    %12 = vsyncpa [#allocation5], 0
    %s13 = scalar_lea.sflag [#allocation5], 1
    %14 = vsyncpa %s13, 0
    loop: start=0, step=1, limit=4
    $region2: #{tpu_custom_call.1} parent=1 // loop_pre_header
      _
    $region3: #{tpu_custom_call.1} parent=1 // loop_header
      %s16 = sphi 0, %s20
      %p17 = scmp.ge.s32.totalorder %s16, 4
      %s23 = sphi 0, %s35
      %s24 = sphi 0, %s31
      %s25 = sphi 0, %s23
      %s26 = sphi 0, %s24
      %s27 = sphi 0, %s25
      %s28 = sphi 0, %s26
      %s38 = sphi 0, %s40
      %s41 = sphi 0, %s38
      %s42 = sphi 0, %s41
      %s58 = sphi 0, %s42
      %s62 = sphi 0, %s62
      %s64 = sphi 0, %s62
      %s65 = sphi 0, %s64
      %s79 = sphi 0, %s65
      %s83 = sphi 0, %s83
      %s85 = sphi 0, %s83
      %s86 = sphi 0, %s85
      %s100 = sphi 0, %s86
      %s108 = sphi 0, %s110
      %s111 = sphi 0, %s108
      %s112 = sphi 0, %s111
      %s128 = sphi 0, %s112
    $region4: #{tpu_custom_call.1} parent=1 // loop_header_branch
      %19 = sbr.rel (%p17) target = $region8
    $region5: #{tpu_custom_call.1} parent=1 // loop_body
      %s21 = ssub.s32 %s16, 1
      %s22 = ssub.s32 %s16, 2
      %s29 = sadd.s32 1, %s24
      %p30 = scmp.ge.s32.totalorder %s29, 1
      %s31 = scalar_select %p30, 0, %s29
      %s32 = sadd.s32 1, %s23
      %s33 = scalar_select %p30, %s32, %s23
      %p34 = scmp.ge.s32.totalorder %s33, 2
      %s35 = scalar_select %p34, 0, %s33
      %s36 = ssub.s32 %s23, %s35
      %p37 = scmp.eq.s32.totalorder %s36, 0
      %s39 = sadd.s32 %s38, 1
      %s40 = scalar_select %p37, %s38, %s39
      %p43 = pneg %p37
      %p44 = scmp.eq.s32.totalorder %s16, 1
      %p45 = por %p43, %p44
      %p46 = scmp.ne.s32.totalorder %s38, %s41
      %p47 = scmp.eq.s32.totalorder %s16, 0
      %p48 = por %p46, %p47
      %p49 = scmp.ne.s32.totalorder %s38, %s41
      %p50 = scmp.eq.s32.totalorder %s21, 1
      %p51 = por %p49, %p50
      %p52 = scmp.ne.s32.totalorder %s41, %s42
      %p53 = scmp.eq.s32.totalorder %s21, 0
      %p54 = por %p52, %p53
      %p55 = scmp.ne.s32.totalorder %s41, %s42
      %p56 = scmp.eq.s32.totalorder %s22, 1
      %p57 = por %p55, %p56
      %p59 = scmp.ne.s32.totalorder %s42, %s58
      %p60 = scmp.eq.s32.totalorder %s22, 0
      %p61 = por %p59, %p60
      %s63 = sadd.s32 %s62, 1
      %p66 = scmp.eq.s32.totalorder %s16, 1
      %p67 = scmp.ne.s32.totalorder %s62, %s64
      %p68 = scmp.eq.s32.totalorder %s16, 0
      %p69 = por %p67, %p68
      %p70 = scmp.ne.s32.totalorder %s62, %s64
      %p71 = scmp.eq.s32.totalorder %s21, 1
      %p72 = por %p70, %p71
      %p73 = scmp.ne.s32.totalorder %s64, %s65
      %p74 = scmp.eq.s32.totalorder %s21, 0
      %p75 = por %p73, %p74
      %p76 = scmp.ne.s32.totalorder %s64, %s65
      %p77 = scmp.eq.s32.totalorder %s22, 1
      %p78 = por %p76, %p77
      %p80 = scmp.ne.s32.totalorder %s65, %s79
      %p81 = scmp.eq.s32.totalorder %s22, 0
      %p82 = por %p80, %p81
      %s84 = sadd.s32 %s83, 1
      %p87 = scmp.eq.s32.totalorder %s16, 1
      %p88 = scmp.ne.s32.totalorder %s83, %s85
      %p89 = scmp.eq.s32.totalorder %s16, 0
      %p90 = por %p88, %p89
      %p91 = scmp.ne.s32.totalorder %s83, %s85
      %p92 = scmp.eq.s32.totalorder %s21, 1
      %p93 = por %p91, %p92
      %p94 = scmp.ne.s32.totalorder %s85, %s86
      %p95 = scmp.eq.s32.totalorder %s21, 0
      %p96 = por %p94, %p95
      %p97 = scmp.ne.s32.totalorder %s85, %s86
      %p98 = scmp.eq.s32.totalorder %s22, 1
      %p99 = por %p97, %p98
      %p101 = scmp.ne.s32.totalorder %s86, %s100
      %p102 = scmp.eq.s32.totalorder %s22, 0
      %p103 = por %p101, %p102
      %s104 = ssub.s32 %s23, %s35
      %s105 = ssub.s32 %s24, %s31
      %s106 = sor.u32 %s104, %s105
      %p107 = scmp.eq.s32.totalorder %s106, 0
      %s109 = sadd.s32 %s108, 1
      %s110 = scalar_select %p107, %s108, %s109
      %p113 = pneg %p107
      %p114 = scmp.eq.s32.totalorder %s16, 1
      %p115 = por %p113, %p114
      %p116 = scmp.ne.s32.totalorder %s108, %s111
      %p117 = scmp.eq.s32.totalorder %s16, 0
      %p118 = por %p116, %p117
      %p119 = scmp.ne.s32.totalorder %s108, %s111
      %p120 = scmp.eq.s32.totalorder %s21, 1
      %p121 = por %p119, %p120
      %p122 = scmp.ne.s32.totalorder %s111, %s112
      %p123 = scmp.eq.s32.totalorder %s21, 0
      %p124 = por %p122, %p123
      %p125 = scmp.ne.s32.totalorder %s111, %s112
      %p126 = scmp.eq.s32.totalorder %s22, 1
      %p127 = por %p125, %p126
      %p129 = scmp.ne.s32.totalorder %s112, %s128
      %p130 = scmp.eq.s32.totalorder %s22, 0
      %p131 = por %p129, %p130
      %p132 = scmp.le.s32.totalorder 1, %s16
      %p133 = scmp.lt.s32.totalorder %s16, 3
      %p134 = pnand %p132, %p133
      %p135 = pneg %p134
      // Predicated region
      $region9: #{tpu_custom_call.1} parent=5 // pred_check
        _
      $region10: #{tpu_custom_call.1} parent=5 // pred_check_branch
        %137 = sbr.rel (%p134) target = $region12
      $region11: #{tpu_custom_call.1} parent=5 // pred_region
        %s138 = ssub.s32 %s16, 1
        // Predicated region
        $region13: #{tpu_custom_call.1} parent=11 // pred_check
          %p139 = pneg %p75
        $region14: #{tpu_custom_call.1} parent=11 // pred_check_branch
          %141 = sbr.rel (%p139) target = $region16
        $region15: #{tpu_custom_call.1} parent=11 // pred_region
          %s143 = ssub.s32 320, 320
          %144 = vsyncadd [#allocation7], %s143
          %s145 = sshll.u32 [#allocation6], 4
          %s146 = int_to_ptr.vmem [resolvable:$true] %s145
          %151 = dma.hbm_to_vmem [thread:$0]  %s1, 320, %s146, [#allocation7], 64, 64, 4
        $region16: #{tpu_custom_call.1} parent=11 // pred_fallthru
          _
        // Predicated region
        $region17: #{tpu_custom_call.1} parent=11 // pred_check
          %p152 = pneg %p96
        $region18: #{tpu_custom_call.1} parent=11 // pred_check_branch
          %154 = sbr.rel (%p152) target = $region20
        $region19: #{tpu_custom_call.1} parent=11 // pred_region
          %s156 = ssub.s32 16, 16
          %157 = vsyncadd [#allocation7], %s156
          %s159 = sshll.u32 [#allocation8], 4
          %s160 = int_to_ptr.vmem [resolvable:$true] %s159
          %162 = dma.hbm_to_vmem [thread:$0]  %s2, 16, %s160, [#allocation7]
        $region20: #{tpu_custom_call.1} parent=11 // pred_fallthru
          _
      $region12: #{tpu_custom_call.1} parent=5 // pred_fallthru
        _
      %p163 = scmp.lt.s32.totalorder %s16, 2
      // Predicated region
      $region21: #{tpu_custom_call.1} parent=5 // pred_check
        %p164 = pneg %p163
      $region22: #{tpu_custom_call.1} parent=5 // pred_check_branch
        %166 = sbr.rel (%p164) target = $region24
      $region23: #{tpu_custom_call.1} parent=5 // pred_region
        // Predicated region
        $region25: #{tpu_custom_call.1} parent=23 // pred_check
          %p167 = pneg %p48
        $region26: #{tpu_custom_call.1} parent=23 // pred_check_branch
          %169 = sbr.rel (%p167) target = $region28
        $region27: #{tpu_custom_call.1} parent=23 // pred_region
          %s170 = sand.u32 %s38, 1
          %s171 = scalar_lea.sflag [#allocation4], %s170
          %s172 = sand.u32 %s38, 1
          %s173 = smul.addr %s172, 164
          %s174 = scalar_lea.vmem [#allocation3], %s173
          %s176 = ssub.s32 2624, 2624
          %177 = vsyncadd %s171, %s176
          %s178 = smul.addr %s23, 41
          %s179 = smul.addr %s178, 64
          %s180 = scalar_lea.hbm %s0, %s179
          %s181 = sshll.u32 %s174, 4
          %s182 = int_to_ptr.vmem [resolvable:$true] %s181
          %187 = dma.hbm_to_vmem [thread:$0]  %s180, 2624, %s182, %s171, 64, 64, 4
        $region28: #{tpu_custom_call.1} parent=23 // pred_fallthru
          _
      $region24: #{tpu_custom_call.1} parent=5 // pred_fallthru
        _
      %p188 = scmp.le.s32.totalorder 1, %s16
      %p189 = scmp.lt.s32.totalorder %s16, 3
      %p190 = pnand %p188, %p189
      %p191 = pneg %p190
      // Predicated region
      $region29: #{tpu_custom_call.1} parent=5 // pred_check
        _
      $region30: #{tpu_custom_call.1} parent=5 // pred_check_branch
        %193 = sbr.rel (%p190) target = $region32
      $region31: #{tpu_custom_call.1} parent=5 // pred_region
        %s194 = ssub.s32 %s16, 1
        %s195 = sand.u32 %s41, 1
        %s196 = scalar_lea.sflag [#allocation4], %s195
        %s197 = sand.u32 %s41, 1
        %s198 = smul.addr %s197, 164
        %s199 = scalar_lea.vmem [#allocation3], %s198
        // Predicated region
        $region33: #{tpu_custom_call.1} parent=31 // pred_check
          %p200 = pneg %p54
        $region34: #{tpu_custom_call.1} parent=31 // pred_check_branch
          %202 = sbr.rel (%p200) target = $region36
        $region35: #{tpu_custom_call.1} parent=31 // pred_region
          %203 = dma.done %s196, 2624
        $region36: #{tpu_custom_call.1} parent=31 // pred_fallthru
          _
        // Predicated region
        $region37: #{tpu_custom_call.1} parent=31 // pred_check
          %p204 = pneg %p75
        $region38: #{tpu_custom_call.1} parent=31 // pred_check_branch
          %206 = sbr.rel (%p204) target = $region40
        $region39: #{tpu_custom_call.1} parent=31 // pred_region
          %207 = dma.done [#allocation7], 320
        $region40: #{tpu_custom_call.1} parent=31 // pred_fallthru
          _
        // Predicated region
        $region41: #{tpu_custom_call.1} parent=31 // pred_check
          %p208 = pneg %p96
        $region42: #{tpu_custom_call.1} parent=31 // pred_check_branch
          %210 = sbr.rel (%p208) target = $region44
        $region43: #{tpu_custom_call.1} parent=31 // pred_region
          %211 = dma.done [#allocation7], 16
        $region44: #{tpu_custom_call.1} parent=31 // pred_fallthru
          _
        %s212 = sand.u32 %s41, 1
        %s213 = scalar_lea.sflag [#allocation4], %s212
        %s214 = sand.u32 %s41, 1
        %s215 = smul.addr %s214, 164
        %s216 = scalar_lea.vmem [#allocation3], %s215
        %p217 = pneg %p54
        %p218 = pneg %p51
        %p219 = pneg %p75
        %p220 = pneg %p72
        %p221 = pneg %p96
        %p222 = pneg %p93
        %p223 = pneg %p124
        %p224 = pneg %p121
        %s225 = sand.u32 %s111, 1
        %s226 = scalar_lea.sflag [#allocation5], %s225
        %s227 = sand.u32 %s111, 1
        %s228 = smul.addr %s227, 144
        %s229 = scalar_lea.vmem [#allocation9], %s228
        %s230 = smul.u32 36, %s26
        %v232 = vld [vmem:[%s199] sm:$0xf]
        %v233 = vld [vmem:[%s199 + $0x4] sm:$0xf]
        %v234 = vld [vmem:[%s199 + $0x8] sm:$0xf]
        %v235 = vld [vmem:[%s199 + $0xc] sm:$0xf]
        %v236 = vld [vmem:[%s199 + $0x10] sm:$0xf]
        %v237 = vld [vmem:[%s199 + $0x14] sm:$0xf]
        %v238 = vld [vmem:[%s199 + $0x18] sm:$0xf]
        %v239 = vld [vmem:[%s199 + $0x1c] sm:$0xf]
        %v240 = vld [vmem:[%s199 + $0x20] sm:$0xf]
        %v241 = vld [vmem:[%s199 + $0x24] sm:$0xf]
        %v242 = vld [vmem:[%s199 + $0x28] sm:$0xf]
        %v243 = vld [vmem:[%s199 + $0x2c] sm:$0xf]
        %v244 = vld [vmem:[%s199 + $0x30] sm:$0xf]
        %v245 = vld [vmem:[%s199 + $0x34] sm:$0xf]
        %v246 = vld [vmem:[%s199 + $0x38] sm:$0xf]
        %v247 = vld [vmem:[%s199 + $0x3c] sm:$0xf]
        %v248 = vld [vmem:[%s199 + $0x40] sm:$0xf]
        %v249 = vld [vmem:[%s199 + $0x44] sm:$0xf]
        %v250 = vld [vmem:[%s199 + $0x48] sm:$0xf]
        %v251 = vld [vmem:[%s199 + $0x4c] sm:$0xf]
        %v252 = vld [vmem:[%s199 + $0x50] sm:$0xf]
        %v253 = vld [vmem:[%s199 + $0x54] sm:$0xf]
        %v254 = vld [vmem:[%s199 + $0x58] sm:$0xf]
        %v255 = vld [vmem:[%s199 + $0x5c] sm:$0xf]
        %v256 = vld [vmem:[%s199 + $0x60] sm:$0xf]
        %v257 = vld [vmem:[%s199 + $0x64] sm:$0xf]
        %v258 = vld [vmem:[%s199 + $0x68] sm:$0xf]
        %v259 = vld [vmem:[%s199 + $0x6c] sm:$0xf]
        %v260 = vld [vmem:[%s199 + $0x70] sm:$0xf]
        %v261 = vld [vmem:[%s199 + $0x74] sm:$0xf]
        %v262 = vld [vmem:[%s199 + $0x78] sm:$0xf]
        %v263 = vld [vmem:[%s199 + $0x7c] sm:$0xf]
        %v264 = vld [vmem:[%s199 + $0x80] sm:$0xf]
        %v265 = vld [vmem:[%s199 + $0x84] sm:$0xf]
        %v266 = vld [vmem:[%s199 + $0x88] sm:$0xf]
        %v267 = vld [vmem:[%s199 + $0x8c] sm:$0xf]
        %v268 = vld [vmem:[%s199 + $0x90] sm:$0xf]
        %v269 = vld [vmem:[%s199 + $0x94] sm:$0xf]
        %v270 = vld [vmem:[%s199 + $0x98] sm:$0xf]
        %v271 = vld [vmem:[%s199 + $0x9c] sm:$0xf]
        %v272 = vld [vmem:[%s199 + $0xa0] sm:$0x7]
        %v309 = vunpack.c.l.b16 %v232
        %v310 = vunpack.c.l.b16 %v233
        %v311 = vunpack.c.l.b16 %v234
        %v312 = vunpack.c.l.b16 %v235
        %v313 = vunpack.c.l.b16 %v236
        %v314 = vunpack.c.l.b16 %v237
        %v315 = vunpack.c.l.b16 %v238
        %v316 = vunpack.c.l.b16 %v239
        %v317 = vunpack.c.l.b16 %v240
        %v318 = vunpack.c.l.b16 %v241
        %v319 = vunpack.c.l.b16 %v242
        %v320 = vunpack.c.l.b16 %v243
        %v321 = vunpack.c.l.b16 %v244
        %v322 = vunpack.c.l.b16 %v245
        %v323 = vunpack.c.l.b16 %v246
        %v324 = vunpack.c.l.b16 %v247
        %v325 = vunpack.c.l.b16 %v248
        %v326 = vunpack.c.l.b16 %v249
        %v327 = vunpack.c.l.b16 %v250
        %v328 = vunpack.c.l.b16 %v251
        %v329 = vunpack.c.l.b16 %v252
        %v330 = vunpack.c.l.b16 %v253
        %v331 = vunpack.c.l.b16 %v254
        %v332 = vunpack.c.l.b16 %v255
        %v333 = vunpack.c.l.b16 %v256
        %v334 = vunpack.c.l.b16 %v257
        %v335 = vunpack.c.l.b16 %v258
        %v336 = vunpack.c.l.b16 %v259
        %v337 = vunpack.c.l.b16 %v260
        %v338 = vunpack.c.l.b16 %v261
        %v339 = vunpack.c.l.b16 %v262
        %v340 = vunpack.c.l.b16 %v263
        %v341 = vunpack.c.l.b16 %v264
        %v342 = vunpack.c.l.b16 %v265
        %v343 = vunpack.c.l.b16 %v266
        %v344 = vunpack.c.l.b16 %v267
        %v345 = vpack.c.b16 %v310, %v309
        %v346 = vpack.c.b16 %v312, %v311
        %v347 = vpack.c.b16 %v314, %v313
        %v348 = vpack.c.b16 %v316, %v315
        %v349 = vpack.c.b16 %v318, %v317
        %v350 = vpack.c.b16 %v320, %v319
        %v351 = vpack.c.b16 %v322, %v321
        %v352 = vpack.c.b16 %v324, %v323
        %v353 = vpack.c.b16 %v326, %v325
        %v354 = vpack.c.b16 %v328, %v327
        %v355 = vpack.c.b16 %v330, %v329
        %v356 = vpack.c.b16 %v332, %v331
        %v357 = vpack.c.b16 %v334, %v333
        %v358 = vpack.c.b16 %v336, %v335
        %v359 = vpack.c.b16 %v338, %v337
        %v360 = vpack.c.b16 %v340, %v339
        %v361 = vpack.c.b16 %v342, %v341
        %v362 = vpack.c.b16 %v344, %v343
        %vm381 = vcmask 31744
        %382 = vst.msk [vmem:[#allocation2] sm:$0xff] %vm381, %v345
        %383 = vst.msk [vmem:[#allocation2 + $0x8] sm:$0xff] %vm381, %v346
        %384 = vst.msk [vmem:[#allocation2 + $0x10] sm:$0xff] %vm381, %v347
        %385 = vst.msk [vmem:[#allocation2 + $0x18] sm:$0xff] %vm381, %v348
        %386 = vst.msk [vmem:[#allocation2 + $0x20] sm:$0xff] %vm381, %v349
        %387 = vst.msk [vmem:[#allocation2 + $0x28] sm:$0xff] %vm381, %v350
        %388 = vst.msk [vmem:[#allocation2 + $0x30] sm:$0xff] %vm381, %v351
        %389 = vst.msk [vmem:[#allocation2 + $0x38] sm:$0xff] %vm381, %v352
        %390 = vst.msk [vmem:[#allocation2 + $0x40] sm:$0xff] %vm381, %v353
        %391 = vst.msk [vmem:[#allocation2 + $0x48] sm:$0xff] %vm381, %v354
        %392 = vst.msk [vmem:[#allocation2 + $0x50] sm:$0xff] %vm381, %v355
        %393 = vst.msk [vmem:[#allocation2 + $0x58] sm:$0xff] %vm381, %v356
        %394 = vst.msk [vmem:[#allocation2 + $0x60] sm:$0xff] %vm381, %v357
        %395 = vst.msk [vmem:[#allocation2 + $0x68] sm:$0xff] %vm381, %v358
        %396 = vst.msk [vmem:[#allocation2 + $0x70] sm:$0xff] %vm381, %v359
        %397 = vst.msk [vmem:[#allocation2 + $0x78] sm:$0xff] %vm381, %v360
        %398 = vst.msk [vmem:[#allocation2 + $0x80] sm:$0xff] %vm381, %v361
        %399 = vst.msk [vmem:[#allocation2 + $0x88] sm:$0xff] %vm381, %v362
        %v401 = vunpack.c.l.b16 %v268
        %v402 = vpack.c.b16 %v401, %v401
        %vm403 = vsmask.f32 7424
        %v405 = vshrl.u32 %v345, 16
        %v407 = vshll.u32 %v345, 16
        %v409 = vrot.slane %v407, 1
        %v410 = vor.u32 %v405, %v409
        %v412 = vshll.u32 %v346, 16
        %v414 = vrot.slane %v412, 1
        %v415 = vsel %vm403, %v410, %v414
        %v416 = vshrl.u32 %v346, 16
        %v418 = vor.u32 %v416, %v414
        %v420 = vshll.u32 %v347, 16
        %v422 = vrot.slane %v420, 1
        %v423 = vsel %vm403, %v418, %v422
        %v424 = vshrl.u32 %v347, 16
        %v426 = vor.u32 %v424, %v422
        %v428 = vshll.u32 %v348, 16
        %v430 = vrot.slane %v428, 1
        %v431 = vsel %vm403, %v426, %v430
        %v432 = vshrl.u32 %v348, 16
        %v434 = vor.u32 %v432, %v430
        %v436 = vshll.u32 %v349, 16
        %v438 = vrot.slane %v436, 1
        %v439 = vsel %vm403, %v434, %v438
        %v440 = vshrl.u32 %v349, 16
        %v442 = vor.u32 %v440, %v438
        %v444 = vshll.u32 %v350, 16
        %v446 = vrot.slane %v444, 1
        %v447 = vsel %vm403, %v442, %v446
        %v448 = vshrl.u32 %v350, 16
        %v450 = vor.u32 %v448, %v446
        %v452 = vshll.u32 %v351, 16
        %v454 = vrot.slane %v452, 1
        %v455 = vsel %vm403, %v450, %v454
        %v456 = vshrl.u32 %v351, 16
        %v458 = vor.u32 %v456, %v454
        %v460 = vshll.u32 %v352, 16
        %v462 = vrot.slane %v460, 1
        %v463 = vsel %vm403, %v458, %v462
        %v464 = vshrl.u32 %v352, 16
        %v466 = vor.u32 %v464, %v462
        %v468 = vshll.u32 %v353, 16
        %v470 = vrot.slane %v468, 1
        %v471 = vsel %vm403, %v466, %v470
        %v472 = vshrl.u32 %v353, 16
        %v474 = vor.u32 %v472, %v470
        %v476 = vshll.u32 %v354, 16
        %v478 = vrot.slane %v476, 1
        %v479 = vsel %vm403, %v474, %v478
        %v480 = vshrl.u32 %v354, 16
        %v482 = vor.u32 %v480, %v478
        %v484 = vshll.u32 %v355, 16
        %v486 = vrot.slane %v484, 1
        %v487 = vsel %vm403, %v482, %v486
        %v488 = vshrl.u32 %v355, 16
        %v490 = vor.u32 %v488, %v486
        %v492 = vshll.u32 %v356, 16
        %v494 = vrot.slane %v492, 1
        %v495 = vsel %vm403, %v490, %v494
        %v496 = vshrl.u32 %v356, 16
        %v498 = vor.u32 %v496, %v494
        %v500 = vshll.u32 %v357, 16
        %v502 = vrot.slane %v500, 1
        %v503 = vsel %vm403, %v498, %v502
        %v504 = vshrl.u32 %v357, 16
        %v506 = vor.u32 %v504, %v502
        %v508 = vshll.u32 %v358, 16
        %v510 = vrot.slane %v508, 1
        %v511 = vsel %vm403, %v506, %v510
        %v512 = vshrl.u32 %v358, 16
        %v514 = vor.u32 %v512, %v510
        %v516 = vshll.u32 %v359, 16
        %v518 = vrot.slane %v516, 1
        %v519 = vsel %vm403, %v514, %v518
        %v520 = vshrl.u32 %v359, 16
        %v522 = vor.u32 %v520, %v518
        %v524 = vshll.u32 %v360, 16
        %v526 = vrot.slane %v524, 1
        %v527 = vsel %vm403, %v522, %v526
        %v528 = vshrl.u32 %v360, 16
        %v530 = vor.u32 %v528, %v526
        %v532 = vshll.u32 %v361, 16
        %v534 = vrot.slane %v532, 1
        %v535 = vsel %vm403, %v530, %v534
        %v536 = vshrl.u32 %v361, 16
        %v538 = vor.u32 %v536, %v534
        %v540 = vshll.u32 %v362, 16
        %v542 = vrot.slane %v540, 1
        %v543 = vsel %vm403, %v538, %v542
        %v544 = vshrl.u32 %v362, 16
        %v546 = vor.u32 %v544, %v542
        %v548 = vshll.u32 %v402, 16
        %v550 = vrot.slane %v548, 1
        %v551 = vsel %vm403, %v546, %v550
        %552 = vrot.lane.b32.xlu0 %v415, 4
        %v553 = vpop.permute.xlu0 %552
        %554 = vrot.lane.b32.xlu0 %v423, 4
        %v555 = vpop.permute.xlu0 %554
        %556 = vrot.lane.b32.xlu0 %v431, 4
        %v557 = vpop.permute.xlu0 %556
        %558 = vrot.lane.b32.xlu0 %v439, 4
        %v559 = vpop.permute.xlu0 %558
        %560 = vrot.lane.b32.xlu0 %v447, 4
        %v561 = vpop.permute.xlu0 %560
        %562 = vrot.lane.b32.xlu0 %v455, 4
        %v563 = vpop.permute.xlu0 %562
        %564 = vrot.lane.b32.xlu0 %v463, 4
        %v565 = vpop.permute.xlu0 %564
        %566 = vrot.lane.b32.xlu0 %v471, 4
        %v567 = vpop.permute.xlu0 %566
        %568 = vrot.lane.b32.xlu0 %v479, 4
        %v569 = vpop.permute.xlu0 %568
        %570 = vrot.lane.b32.xlu0 %v487, 4
        %v571 = vpop.permute.xlu0 %570
        %572 = vrot.lane.b32.xlu0 %v495, 4
        %v573 = vpop.permute.xlu0 %572
        %574 = vrot.lane.b32.xlu0 %v503, 4
        %v575 = vpop.permute.xlu0 %574
        %576 = vrot.lane.b32.xlu0 %v511, 4
        %v577 = vpop.permute.xlu0 %576
        %578 = vrot.lane.b32.xlu0 %v519, 4
        %v579 = vpop.permute.xlu0 %578
        %580 = vrot.lane.b32.xlu0 %v527, 4
        %v581 = vpop.permute.xlu0 %580
        %582 = vrot.lane.b32.xlu0 %v535, 4
        %v583 = vpop.permute.xlu0 %582
        %584 = vrot.lane.b32.xlu0 %v543, 4
        %v585 = vpop.permute.xlu0 %584
        %586 = vrot.lane.b32.xlu0 %v551, 4
        %v587 = vpop.permute.xlu0 %586
        %vm606 = vcmask 64544
        %607 = vst.msk [vmem:[#allocation2] sm:$0xff] %vm606, %v553
        %608 = vst.msk [vmem:[#allocation2 + $0x8] sm:$0xff] %vm606, %v555
        %609 = vst.msk [vmem:[#allocation2 + $0x10] sm:$0xff] %vm606, %v557
        %610 = vst.msk [vmem:[#allocation2 + $0x18] sm:$0xff] %vm606, %v559
        %611 = vst.msk [vmem:[#allocation2 + $0x20] sm:$0xff] %vm606, %v561
        %612 = vst.msk [vmem:[#allocation2 + $0x28] sm:$0xff] %vm606, %v563
        %613 = vst.msk [vmem:[#allocation2 + $0x30] sm:$0xff] %vm606, %v565
        %614 = vst.msk [vmem:[#allocation2 + $0x38] sm:$0xff] %vm606, %v567
        %615 = vst.msk [vmem:[#allocation2 + $0x40] sm:$0xff] %vm606, %v569
        %616 = vst.msk [vmem:[#allocation2 + $0x48] sm:$0xff] %vm606, %v571
        %617 = vst.msk [vmem:[#allocation2 + $0x50] sm:$0xff] %vm606, %v573
        %618 = vst.msk [vmem:[#allocation2 + $0x58] sm:$0xff] %vm606, %v575
        %619 = vst.msk [vmem:[#allocation2 + $0x60] sm:$0xff] %vm606, %v577
        %620 = vst.msk [vmem:[#allocation2 + $0x68] sm:$0xff] %vm606, %v579
        %621 = vst.msk [vmem:[#allocation2 + $0x70] sm:$0xff] %vm606, %v581
        %622 = vst.msk [vmem:[#allocation2 + $0x78] sm:$0xff] %vm606, %v583
        %623 = vst.msk [vmem:[#allocation2 + $0x80] sm:$0xff] %vm606, %v585
        %624 = vst.msk [vmem:[#allocation2 + $0x88] sm:$0xff] %vm606, %v587
        %vm625 = vcmask 1046528
        %v626 = vrot.slane %v345, 1
        %v627 = vrot.slane %v346, 1
        %v628 = vsel %vm625, %v626, %v627
        %v629 = vrot.slane %v347, 1
        %v630 = vsel %vm625, %v627, %v629
        %v631 = vrot.slane %v348, 1
        %v632 = vsel %vm625, %v629, %v631
        %v633 = vrot.slane %v349, 1
        %v634 = vsel %vm625, %v631, %v633
        %v635 = vrot.slane %v350, 1
        %v636 = vsel %vm625, %v633, %v635
        %v637 = vrot.slane %v351, 1
        %v638 = vsel %vm625, %v635, %v637
        %v639 = vrot.slane %v352, 1
        %v640 = vsel %vm625, %v637, %v639
        %v641 = vrot.slane %v353, 1
        %v642 = vsel %vm625, %v639, %v641
        %v643 = vrot.slane %v354, 1
        %v644 = vsel %vm625, %v641, %v643
        %v645 = vrot.slane %v355, 1
        %v646 = vsel %vm625, %v643, %v645
        %v647 = vrot.slane %v356, 1
        %v648 = vsel %vm625, %v645, %v647
        %v649 = vrot.slane %v357, 1
        %v650 = vsel %vm625, %v647, %v649
        %v651 = vrot.slane %v358, 1
        %v652 = vsel %vm625, %v649, %v651
        %v653 = vrot.slane %v359, 1
        %v654 = vsel %vm625, %v651, %v653
        %v655 = vrot.slane %v360, 1
        %v656 = vsel %vm625, %v653, %v655
        %v657 = vrot.slane %v361, 1
        %v658 = vsel %vm625, %v655, %v657
        %v659 = vrot.slane %v362, 1
        %v660 = vsel %vm625, %v657, %v659
        %v661 = vrot.slane %v402, 1
        %v662 = vsel %vm625, %v659, %v661
        %663 = vrot.lane.b32.xlu0 %v628, 8
        %v664 = vpop.permute.xlu0 %663
        %665 = vrot.lane.b32.xlu0 %v630, 8
        %v666 = vpop.permute.xlu0 %665
        %667 = vrot.lane.b32.xlu0 %v632, 8
        %v668 = vpop.permute.xlu0 %667
        %669 = vrot.lane.b32.xlu0 %v634, 8
        %v670 = vpop.permute.xlu0 %669
        %671 = vrot.lane.b32.xlu0 %v636, 8
        %v672 = vpop.permute.xlu0 %671
        %673 = vrot.lane.b32.xlu0 %v638, 8
        %v674 = vpop.permute.xlu0 %673
        %675 = vrot.lane.b32.xlu0 %v640, 8
        %v676 = vpop.permute.xlu0 %675
        %677 = vrot.lane.b32.xlu0 %v642, 8
        %v678 = vpop.permute.xlu0 %677
        %679 = vrot.lane.b32.xlu0 %v644, 8
        %v680 = vpop.permute.xlu0 %679
        %681 = vrot.lane.b32.xlu0 %v646, 8
        %v682 = vpop.permute.xlu0 %681
        %683 = vrot.lane.b32.xlu0 %v648, 8
        %v684 = vpop.permute.xlu0 %683
        %685 = vrot.lane.b32.xlu0 %v650, 8
        %v686 = vpop.permute.xlu0 %685
        %687 = vrot.lane.b32.xlu0 %v652, 8
        %v688 = vpop.permute.xlu0 %687
        %689 = vrot.lane.b32.xlu0 %v654, 8
        %v690 = vpop.permute.xlu0 %689
        %691 = vrot.lane.b32.xlu0 %v656, 8
        %v692 = vpop.permute.xlu0 %691
        %693 = vrot.lane.b32.xlu0 %v658, 8
        %v694 = vpop.permute.xlu0 %693
        %695 = vrot.lane.b32.xlu0 %v660, 8
        %v696 = vpop.permute.xlu0 %695
        %697 = vrot.lane.b32.xlu0 %v662, 8
        %v698 = vpop.permute.xlu0 %697
        %vm717 = vcmask 97344
        %718 = vst.msk [vmem:[#allocation2] sm:$0xff] %vm717, %v664
        %719 = vst.msk [vmem:[#allocation2 + $0x8] sm:$0xff] %vm717, %v666
        %720 = vst.msk [vmem:[#allocation2 + $0x10] sm:$0xff] %vm717, %v668
        %721 = vst.msk [vmem:[#allocation2 + $0x18] sm:$0xff] %vm717, %v670
        %722 = vst.msk [vmem:[#allocation2 + $0x20] sm:$0xff] %vm717, %v672
        %723 = vst.msk [vmem:[#allocation2 + $0x28] sm:$0xff] %vm717, %v674
        %724 = vst.msk [vmem:[#allocation2 + $0x30] sm:$0xff] %vm717, %v676
        %725 = vst.msk [vmem:[#allocation2 + $0x38] sm:$0xff] %vm717, %v678
        %726 = vst.msk [vmem:[#allocation2 + $0x40] sm:$0xff] %vm717, %v680
        %727 = vst.msk [vmem:[#allocation2 + $0x48] sm:$0xff] %vm717, %v682
        %728 = vst.msk [vmem:[#allocation2 + $0x50] sm:$0xff] %vm717, %v684
        %729 = vst.msk [vmem:[#allocation2 + $0x58] sm:$0xff] %vm717, %v686
        %730 = vst.msk [vmem:[#allocation2 + $0x60] sm:$0xff] %vm717, %v688
        %731 = vst.msk [vmem:[#allocation2 + $0x68] sm:$0xff] %vm717, %v690
        %732 = vst.msk [vmem:[#allocation2 + $0x70] sm:$0xff] %vm717, %v692
        %733 = vst.msk [vmem:[#allocation2 + $0x78] sm:$0xff] %vm717, %v694
        %734 = vst.msk [vmem:[#allocation2 + $0x80] sm:$0xff] %vm717, %v696
        %735 = vst.msk [vmem:[#allocation2 + $0x88] sm:$0xff] %vm717, %v698
        %v738 = vunpack.c.l.b16 %v269
        %v739 = vunpack.c.l.b16 %v270
        %v740 = vpack.c.b16 %v738, %v401
        %v741 = vpack.c.b16 %v739, %v739
        %v742 = vrot.slane %v740, 1
        %v743 = vsel %vm625, %v659, %v742
        %v744 = vrot.slane %v741, 1
        %v745 = vsel %vm625, %v742, %v744
        %746 = vrot.lane.b32.xlu0 %v630, 12
        %v747 = vpop.permute.xlu0 %746
        %748 = vrot.lane.b32.xlu0 %v632, 12
        %v749 = vpop.permute.xlu0 %748
        %750 = vrot.lane.b32.xlu0 %v634, 12
        %v751 = vpop.permute.xlu0 %750
        %752 = vrot.lane.b32.xlu0 %v636, 12
        %v753 = vpop.permute.xlu0 %752
        %754 = vrot.lane.b32.xlu0 %v638, 12
        %v755 = vpop.permute.xlu0 %754
        %756 = vrot.lane.b32.xlu0 %v640, 12
        %v757 = vpop.permute.xlu0 %756
        %758 = vrot.lane.b32.xlu0 %v642, 12
        %v759 = vpop.permute.xlu0 %758
        %760 = vrot.lane.b32.xlu0 %v644, 12
        %v761 = vpop.permute.xlu0 %760
        %762 = vrot.lane.b32.xlu0 %v646, 12
        %v763 = vpop.permute.xlu0 %762
        %764 = vrot.lane.b32.xlu0 %v648, 12
        %v765 = vpop.permute.xlu0 %764
        %766 = vrot.lane.b32.xlu0 %v650, 12
        %v767 = vpop.permute.xlu0 %766
        %768 = vrot.lane.b32.xlu0 %v652, 12
        %v769 = vpop.permute.xlu0 %768
        %770 = vrot.lane.b32.xlu0 %v654, 12
        %v771 = vpop.permute.xlu0 %770
        %772 = vrot.lane.b32.xlu0 %v656, 12
        %v773 = vpop.permute.xlu0 %772
        %774 = vrot.lane.b32.xlu0 %v658, 12
        %v775 = vpop.permute.xlu0 %774
        %776 = vrot.lane.b32.xlu0 %v660, 12
        %v777 = vpop.permute.xlu0 %776
        %778 = vrot.lane.b32.xlu0 %v743, 12
        %v779 = vpop.permute.xlu0 %778
        %780 = vrot.lane.b32.xlu0 %v745, 12
        %v781 = vpop.permute.xlu0 %780
        %vm800 = vcmask 130144
        %801 = vst.msk [vmem:[#allocation2] sm:$0xff] %vm800, %v747
        %802 = vst.msk [vmem:[#allocation2 + $0x8] sm:$0xff] %vm800, %v749
        %803 = vst.msk [vmem:[#allocation2 + $0x10] sm:$0xff] %vm800, %v751
        %804 = vst.msk [vmem:[#allocation2 + $0x18] sm:$0xff] %vm800, %v753
        %805 = vst.msk [vmem:[#allocation2 + $0x20] sm:$0xff] %vm800, %v755
        %806 = vst.msk [vmem:[#allocation2 + $0x28] sm:$0xff] %vm800, %v757
        %807 = vst.msk [vmem:[#allocation2 + $0x30] sm:$0xff] %vm800, %v759
        %808 = vst.msk [vmem:[#allocation2 + $0x38] sm:$0xff] %vm800, %v761
        %809 = vst.msk [vmem:[#allocation2 + $0x40] sm:$0xff] %vm800, %v763
        %810 = vst.msk [vmem:[#allocation2 + $0x48] sm:$0xff] %vm800, %v765
        %811 = vst.msk [vmem:[#allocation2 + $0x50] sm:$0xff] %vm800, %v767
        %812 = vst.msk [vmem:[#allocation2 + $0x58] sm:$0xff] %vm800, %v769
        %813 = vst.msk [vmem:[#allocation2 + $0x60] sm:$0xff] %vm800, %v771
        %814 = vst.msk [vmem:[#allocation2 + $0x68] sm:$0xff] %vm800, %v773
        %815 = vst.msk [vmem:[#allocation2 + $0x70] sm:$0xff] %vm800, %v775
        %816 = vst.msk [vmem:[#allocation2 + $0x78] sm:$0xff] %vm800, %v777
        %817 = vst.msk [vmem:[#allocation2 + $0x80] sm:$0xff] %vm800, %v779
        %818 = vst.msk [vmem:[#allocation2 + $0x88] sm:$0xff] %vm800, %v781
        %vm819 = vsmask.f32 6400
        %v820 = vrot.slane %v416, 1
        %v821 = vrot.slane %v412, 2
        %v822 = vor.u32 %v820, %v821
        %v823 = vrot.slane %v424, 1
        %v824 = vrot.slane %v420, 2
        %v825 = vor.u32 %v823, %v824
        %v826 = vsel %vm819, %v822, %v825
        %v827 = vrot.slane %v432, 1
        %v828 = vrot.slane %v428, 2
        %v829 = vor.u32 %v827, %v828
        %v830 = vsel %vm819, %v825, %v829
        %v831 = vrot.slane %v440, 1
        %v832 = vrot.slane %v436, 2
        %v833 = vor.u32 %v831, %v832
        %v834 = vsel %vm819, %v829, %v833
        %v835 = vrot.slane %v448, 1
        %v836 = vrot.slane %v444, 2
        %v837 = vor.u32 %v835, %v836
        %v838 = vsel %vm819, %v833, %v837
        %v839 = vrot.slane %v456, 1
        %v840 = vrot.slane %v452, 2
        %v841 = vor.u32 %v839, %v840
        %v842 = vsel %vm819, %v837, %v841
        %v843 = vrot.slane %v464, 1
        %v844 = vrot.slane %v460, 2
        %v845 = vor.u32 %v843, %v844
        %v846 = vsel %vm819, %v841, %v845
        %v847 = vrot.slane %v472, 1
        %v848 = vrot.slane %v468, 2
        %v849 = vor.u32 %v847, %v848
        %v850 = vsel %vm819, %v845, %v849
        %v851 = vrot.slane %v480, 1
        %v852 = vrot.slane %v476, 2
        %v853 = vor.u32 %v851, %v852
        %v854 = vsel %vm819, %v849, %v853
        %v855 = vrot.slane %v488, 1
        %v856 = vrot.slane %v484, 2
        %v857 = vor.u32 %v855, %v856
        %v858 = vsel %vm819, %v853, %v857
        %v859 = vrot.slane %v496, 1
        %v860 = vrot.slane %v492, 2
        %v861 = vor.u32 %v859, %v860
        %v862 = vsel %vm819, %v857, %v861
        %v863 = vrot.slane %v504, 1
        %v864 = vrot.slane %v500, 2
        %v865 = vor.u32 %v863, %v864
        %v866 = vsel %vm819, %v861, %v865
        %v867 = vrot.slane %v512, 1
        %v868 = vrot.slane %v508, 2
        %v869 = vor.u32 %v867, %v868
        %v870 = vsel %vm819, %v865, %v869
        %v871 = vrot.slane %v520, 1
        %v872 = vrot.slane %v516, 2
        %v873 = vor.u32 %v871, %v872
        %v874 = vsel %vm819, %v869, %v873
        %v875 = vrot.slane %v528, 1
        %v876 = vrot.slane %v524, 2
        %v877 = vor.u32 %v875, %v876
        %v878 = vsel %vm819, %v873, %v877
        %v879 = vrot.slane %v536, 1
        %v880 = vrot.slane %v532, 2
        %v881 = vor.u32 %v879, %v880
        %v882 = vsel %vm819, %v877, %v881
        %v883 = vrot.slane %v544, 1
        %v884 = vrot.slane %v540, 2
        %v885 = vor.u32 %v883, %v884
        %v886 = vsel %vm819, %v881, %v885
        %v888 = vshrl.u32 %v740, 16
        %v890 = vrot.slane %v888, 1
        %v891 = vshll.u32 %v740, 16
        %v893 = vrot.slane %v891, 2
        %v894 = vor.u32 %v890, %v893
        %v895 = vsel %vm819, %v885, %v894
        %v897 = vshrl.u32 %v741, 16
        %v899 = vrot.slane %v897, 1
        %v900 = vshll.u32 %v741, 16
        %v902 = vrot.slane %v900, 2
        %v903 = vor.u32 %v899, %v902
        %v904 = vsel %vm819, %v894, %v903
        %905 = vrot.lane.b32.xlu0 %v826, 16
        %v906 = vpop.permute.xlu0 %905
        %907 = vrot.lane.b32.xlu0 %v830, 16
        %v908 = vpop.permute.xlu0 %907
        %909 = vrot.lane.b32.xlu0 %v834, 16
        %v910 = vpop.permute.xlu0 %909
        %911 = vrot.lane.b32.xlu0 %v838, 16
        %v912 = vpop.permute.xlu0 %911
        %913 = vrot.lane.b32.xlu0 %v842, 16
        %v914 = vpop.permute.xlu0 %913
        %915 = vrot.lane.b32.xlu0 %v846, 16
        %v916 = vpop.permute.xlu0 %915
        %917 = vrot.lane.b32.xlu0 %v850, 16
        %v918 = vpop.permute.xlu0 %917
        %919 = vrot.lane.b32.xlu0 %v854, 16
        %v920 = vpop.permute.xlu0 %919
        %921 = vrot.lane.b32.xlu0 %v858, 16
        %v922 = vpop.permute.xlu0 %921
        %923 = vrot.lane.b32.xlu0 %v862, 16
        %v924 = vpop.permute.xlu0 %923
        %925 = vrot.lane.b32.xlu0 %v866, 16
        %v926 = vpop.permute.xlu0 %925
        %927 = vrot.lane.b32.xlu0 %v870, 16
        %v928 = vpop.permute.xlu0 %927
        %929 = vrot.lane.b32.xlu0 %v874, 16
        %v930 = vpop.permute.xlu0 %929
        %931 = vrot.lane.b32.xlu0 %v878, 16
        %v932 = vpop.permute.xlu0 %931
        %933 = vrot.lane.b32.xlu0 %v882, 16
        %v934 = vpop.permute.xlu0 %933
        %935 = vrot.lane.b32.xlu0 %v886, 16
        %v936 = vpop.permute.xlu0 %935
        %937 = vrot.lane.b32.xlu0 %v895, 16
        %v938 = vpop.permute.xlu0 %937
        %939 = vrot.lane.b32.xlu0 %v904, 16
        %v940 = vpop.permute.xlu0 %939
        %vm959 = vcmask 162944
        %960 = vst.msk [vmem:[#allocation2] sm:$0xff] %vm959, %v906
        %961 = vst.msk [vmem:[#allocation2 + $0x8] sm:$0xff] %vm959, %v908
        %962 = vst.msk [vmem:[#allocation2 + $0x10] sm:$0xff] %vm959, %v910
        %963 = vst.msk [vmem:[#allocation2 + $0x18] sm:$0xff] %vm959, %v912
        %964 = vst.msk [vmem:[#allocation2 + $0x20] sm:$0xff] %vm959, %v914
        %965 = vst.msk [vmem:[#allocation2 + $0x28] sm:$0xff] %vm959, %v916
        %966 = vst.msk [vmem:[#allocation2 + $0x30] sm:$0xff] %vm959, %v918
        %967 = vst.msk [vmem:[#allocation2 + $0x38] sm:$0xff] %vm959, %v920
        %968 = vst.msk [vmem:[#allocation2 + $0x40] sm:$0xff] %vm959, %v922
        %969 = vst.msk [vmem:[#allocation2 + $0x48] sm:$0xff] %vm959, %v924
        %970 = vst.msk [vmem:[#allocation2 + $0x50] sm:$0xff] %vm959, %v926
        %971 = vst.msk [vmem:[#allocation2 + $0x58] sm:$0xff] %vm959, %v928
        %972 = vst.msk [vmem:[#allocation2 + $0x60] sm:$0xff] %vm959, %v930
        %973 = vst.msk [vmem:[#allocation2 + $0x68] sm:$0xff] %vm959, %v932
        %974 = vst.msk [vmem:[#allocation2 + $0x70] sm:$0xff] %vm959, %v934
        %975 = vst.msk [vmem:[#allocation2 + $0x78] sm:$0xff] %vm959, %v936
        %976 = vst.msk [vmem:[#allocation2 + $0x80] sm:$0xff] %vm959, %v938
        %977 = vst.msk [vmem:[#allocation2 + $0x88] sm:$0xff] %vm959, %v940
        %vm978 = vcmask 1045504
        %v979 = vrot.slane %v346, 2
        %v980 = vrot.slane %v347, 2
        %v981 = vsel %vm978, %v979, %v980
        %v982 = vrot.slane %v348, 2
        %v983 = vsel %vm978, %v980, %v982
        %v984 = vrot.slane %v349, 2
        %v985 = vsel %vm978, %v982, %v984
        %v986 = vrot.slane %v350, 2
        %v987 = vsel %vm978, %v984, %v986
        %v988 = vrot.slane %v351, 2
        %v989 = vsel %vm978, %v986, %v988
        %v990 = vrot.slane %v352, 2
        %v991 = vsel %vm978, %v988, %v990
        %v992 = vrot.slane %v353, 2
        %v993 = vsel %vm978, %v990, %v992
        %v994 = vrot.slane %v354, 2
        %v995 = vsel %vm978, %v992, %v994
        %v996 = vrot.slane %v355, 2
        %v997 = vsel %vm978, %v994, %v996
        %v998 = vrot.slane %v356, 2
        %v999 = vsel %vm978, %v996, %v998
        %v1000 = vrot.slane %v357, 2
        %v1001 = vsel %vm978, %v998, %v1000
        %v1002 = vrot.slane %v358, 2
        %v1003 = vsel %vm978, %v1000, %v1002
        %v1004 = vrot.slane %v359, 2
        %v1005 = vsel %vm978, %v1002, %v1004
        %v1006 = vrot.slane %v360, 2
        %v1007 = vsel %vm978, %v1004, %v1006
        %v1008 = vrot.slane %v361, 2
        %v1009 = vsel %vm978, %v1006, %v1008
        %v1010 = vrot.slane %v362, 2
        %v1011 = vsel %vm978, %v1008, %v1010
        %v1012 = vrot.slane %v740, 2
        %v1013 = vsel %vm978, %v1010, %v1012
        %v1014 = vrot.slane %v741, 2
        %v1015 = vsel %vm978, %v1012, %v1014
        %1016 = vrot.lane.b32.xlu0 %v981, 20
        %v1017 = vpop.permute.xlu0 %1016
        %1018 = vrot.lane.b32.xlu0 %v983, 20
        %v1019 = vpop.permute.xlu0 %1018
        %1020 = vrot.lane.b32.xlu0 %v985, 20
        %v1021 = vpop.permute.xlu0 %1020
        %1022 = vrot.lane.b32.xlu0 %v987, 20
        %v1023 = vpop.permute.xlu0 %1022
        %1024 = vrot.lane.b32.xlu0 %v989, 20
        %v1025 = vpop.permute.xlu0 %1024
        %1026 = vrot.lane.b32.xlu0 %v991, 20
        %v1027 = vpop.permute.xlu0 %1026
        %1028 = vrot.lane.b32.xlu0 %v993, 20
        %v1029 = vpop.permute.xlu0 %1028
        %1030 = vrot.lane.b32.xlu0 %v995, 20
        %v1031 = vpop.permute.xlu0 %1030
        %1032 = vrot.lane.b32.xlu0 %v997, 20
        %v1033 = vpop.permute.xlu0 %1032
        %1034 = vrot.lane.b32.xlu0 %v999, 20
        %v1035 = vpop.permute.xlu0 %1034
        %1036 = vrot.lane.b32.xlu0 %v1001, 20
        %v1037 = vpop.permute.xlu0 %1036
        %1038 = vrot.lane.b32.xlu0 %v1003, 20
        %v1039 = vpop.permute.xlu0 %1038
        %1040 = vrot.lane.b32.xlu0 %v1005, 20
        %v1041 = vpop.permute.xlu0 %1040
        %1042 = vrot.lane.b32.xlu0 %v1007, 20
        %v1043 = vpop.permute.xlu0 %1042
        %1044 = vrot.lane.b32.xlu0 %v1009, 20
        %v1045 = vpop.permute.xlu0 %1044
        %1046 = vrot.lane.b32.xlu0 %v1011, 20
        %v1047 = vpop.permute.xlu0 %1046
        %1048 = vrot.lane.b32.xlu0 %v1013, 20
        %v1049 = vpop.permute.xlu0 %1048
        %1050 = vrot.lane.b32.xlu0 %v1015, 20
        %v1051 = vpop.permute.xlu0 %1050
        %vm1070 = vcmask 195744
        %1071 = vst.msk [vmem:[#allocation2] sm:$0xff] %vm1070, %v1017
        %1072 = vst.msk [vmem:[#allocation2 + $0x8] sm:$0xff] %vm1070, %v1019
        %1073 = vst.msk [vmem:[#allocation2 + $0x10] sm:$0xff] %vm1070, %v1021
        %1074 = vst.msk [vmem:[#allocation2 + $0x18] sm:$0xff] %vm1070, %v1023
        %1075 = vst.msk [vmem:[#allocation2 + $0x20] sm:$0xff] %vm1070, %v1025
        %1076 = vst.msk [vmem:[#allocation2 + $0x28] sm:$0xff] %vm1070, %v1027
        %1077 = vst.msk [vmem:[#allocation2 + $0x30] sm:$0xff] %vm1070, %v1029
        %1078 = vst.msk [vmem:[#allocation2 + $0x38] sm:$0xff] %vm1070, %v1031
        %1079 = vst.msk [vmem:[#allocation2 + $0x40] sm:$0xff] %vm1070, %v1033
        %1080 = vst.msk [vmem:[#allocation2 + $0x48] sm:$0xff] %vm1070, %v1035
        %1081 = vst.msk [vmem:[#allocation2 + $0x50] sm:$0xff] %vm1070, %v1037
        %1082 = vst.msk [vmem:[#allocation2 + $0x58] sm:$0xff] %vm1070, %v1039
        %1083 = vst.msk [vmem:[#allocation2 + $0x60] sm:$0xff] %vm1070, %v1041
        %1084 = vst.msk [vmem:[#allocation2 + $0x68] sm:$0xff] %vm1070, %v1043
        %1085 = vst.msk [vmem:[#allocation2 + $0x70] sm:$0xff] %vm1070, %v1045
        %1086 = vst.msk [vmem:[#allocation2 + $0x78] sm:$0xff] %vm1070, %v1047
        %1087 = vst.msk [vmem:[#allocation2 + $0x80] sm:$0xff] %vm1070, %v1049
        %1088 = vst.msk [vmem:[#allocation2 + $0x88] sm:$0xff] %vm1070, %v1051
        %v1091 = vunpack.c.l.b16 %v271
        %v1092 = vunpack.c.l.b16 %v272
        %v1093 = vpack.c.b16 %v1091, %v739
        %v1094 = vpack.c.b16 %v1092, %v1092
        %v1095 = vrot.slane %v1093, 2
        %v1096 = vsel %vm978, %v1012, %v1095
        %v1097 = vrot.slane %v1094, 2
        %v1098 = vsel %vm978, %v1095, %v1097
        %1099 = vrot.lane.b32.xlu0 %v983, 24
        %v1100 = vpop.permute.xlu0 %1099
        %1101 = vrot.lane.b32.xlu0 %v985, 24
        %v1102 = vpop.permute.xlu0 %1101
        %1103 = vrot.lane.b32.xlu0 %v987, 24
        %v1104 = vpop.permute.xlu0 %1103
        %1105 = vrot.lane.b32.xlu0 %v989, 24
        %v1106 = vpop.permute.xlu0 %1105
        %1107 = vrot.lane.b32.xlu0 %v991, 24
        %v1108 = vpop.permute.xlu0 %1107
        %1109 = vrot.lane.b32.xlu0 %v993, 24
        %v1110 = vpop.permute.xlu0 %1109
        %1111 = vrot.lane.b32.xlu0 %v995, 24
        %v1112 = vpop.permute.xlu0 %1111
        %1113 = vrot.lane.b32.xlu0 %v997, 24
        %v1114 = vpop.permute.xlu0 %1113
        %1115 = vrot.lane.b32.xlu0 %v999, 24
        %v1116 = vpop.permute.xlu0 %1115
        %1117 = vrot.lane.b32.xlu0 %v1001, 24
        %v1118 = vpop.permute.xlu0 %1117
        %1119 = vrot.lane.b32.xlu0 %v1003, 24
        %v1120 = vpop.permute.xlu0 %1119
        %1121 = vrot.lane.b32.xlu0 %v1005, 24
        %v1122 = vpop.permute.xlu0 %1121
        %1123 = vrot.lane.b32.xlu0 %v1007, 24
        %v1124 = vpop.permute.xlu0 %1123
        %1125 = vrot.lane.b32.xlu0 %v1009, 24
        %v1126 = vpop.permute.xlu0 %1125
        %1127 = vrot.lane.b32.xlu0 %v1011, 24
        %v1128 = vpop.permute.xlu0 %1127
        %1129 = vrot.lane.b32.xlu0 %v1013, 24
        %v1130 = vpop.permute.xlu0 %1129
        %1131 = vrot.lane.b32.xlu0 %v1096, 24
        %v1132 = vpop.permute.xlu0 %1131
        %1133 = vrot.lane.b32.xlu0 %v1098, 24
        %v1134 = vpop.permute.xlu0 %1133
        %vm1153 = vcmask 228544
        %1154 = vst.msk [vmem:[#allocation2] sm:$0xff] %vm1153, %v1100
        %1155 = vst.msk [vmem:[#allocation2 + $0x8] sm:$0xff] %vm1153, %v1102
        %1156 = vst.msk [vmem:[#allocation2 + $0x10] sm:$0xff] %vm1153, %v1104
        %1157 = vst.msk [vmem:[#allocation2 + $0x18] sm:$0xff] %vm1153, %v1106
        %1158 = vst.msk [vmem:[#allocation2 + $0x20] sm:$0xff] %vm1153, %v1108
        %1159 = vst.msk [vmem:[#allocation2 + $0x28] sm:$0xff] %vm1153, %v1110
        %1160 = vst.msk [vmem:[#allocation2 + $0x30] sm:$0xff] %vm1153, %v1112
        %1161 = vst.msk [vmem:[#allocation2 + $0x38] sm:$0xff] %vm1153, %v1114
        %1162 = vst.msk [vmem:[#allocation2 + $0x40] sm:$0xff] %vm1153, %v1116
        %1163 = vst.msk [vmem:[#allocation2 + $0x48] sm:$0xff] %vm1153, %v1118
        %1164 = vst.msk [vmem:[#allocation2 + $0x50] sm:$0xff] %vm1153, %v1120
        %1165 = vst.msk [vmem:[#allocation2 + $0x58] sm:$0xff] %vm1153, %v1122
        %1166 = vst.msk [vmem:[#allocation2 + $0x60] sm:$0xff] %vm1153, %v1124
        %1167 = vst.msk [vmem:[#allocation2 + $0x68] sm:$0xff] %vm1153, %v1126
        %1168 = vst.msk [vmem:[#allocation2 + $0x70] sm:$0xff] %vm1153, %v1128
        %1169 = vst.msk [vmem:[#allocation2 + $0x78] sm:$0xff] %vm1153, %v1130
        %1170 = vst.msk [vmem:[#allocation2 + $0x80] sm:$0xff] %vm1153, %v1132
        %1171 = vst.msk [vmem:[#allocation2 + $0x88] sm:$0xff] %vm1153, %v1134
        %vm1172 = vsmask.f32 5376
        %v1173 = vrot.slane %v424, 2
        %v1174 = vrot.slane %v420, 3
        %v1175 = vor.u32 %v1173, %v1174
        %v1176 = vrot.slane %v432, 2
        %v1177 = vrot.slane %v428, 3
        %v1178 = vor.u32 %v1176, %v1177
        %v1179 = vsel %vm1172, %v1175, %v1178
        %v1180 = vrot.slane %v440, 2
        %v1181 = vrot.slane %v436, 3
        %v1182 = vor.u32 %v1180, %v1181
        %v1183 = vsel %vm1172, %v1178, %v1182
        %v1184 = vrot.slane %v448, 2
        %v1185 = vrot.slane %v444, 3
        %v1186 = vor.u32 %v1184, %v1185
        %v1187 = vsel %vm1172, %v1182, %v1186
        %v1188 = vrot.slane %v456, 2
        %v1189 = vrot.slane %v452, 3
        %v1190 = vor.u32 %v1188, %v1189
        %v1191 = vsel %vm1172, %v1186, %v1190
        %v1192 = vrot.slane %v464, 2
        %v1193 = vrot.slane %v460, 3
        %v1194 = vor.u32 %v1192, %v1193
        %v1195 = vsel %vm1172, %v1190, %v1194
        %v1196 = vrot.slane %v472, 2
        %v1197 = vrot.slane %v468, 3
        %v1198 = vor.u32 %v1196, %v1197
        %v1199 = vsel %vm1172, %v1194, %v1198
        %v1200 = vrot.slane %v480, 2
        %v1201 = vrot.slane %v476, 3
        %v1202 = vor.u32 %v1200, %v1201
        %v1203 = vsel %vm1172, %v1198, %v1202
        %v1204 = vrot.slane %v488, 2
        %v1205 = vrot.slane %v484, 3
        %v1206 = vor.u32 %v1204, %v1205
        %v1207 = vsel %vm1172, %v1202, %v1206
        %v1208 = vrot.slane %v496, 2
        %v1209 = vrot.slane %v492, 3
        %v1210 = vor.u32 %v1208, %v1209
        %v1211 = vsel %vm1172, %v1206, %v1210
        %v1212 = vrot.slane %v504, 2
        %v1213 = vrot.slane %v500, 3
        %v1214 = vor.u32 %v1212, %v1213
        %v1215 = vsel %vm1172, %v1210, %v1214
        %v1216 = vrot.slane %v512, 2
        %v1217 = vrot.slane %v508, 3
        %v1218 = vor.u32 %v1216, %v1217
        %v1219 = vsel %vm1172, %v1214, %v1218
        %v1220 = vrot.slane %v520, 2
        %v1221 = vrot.slane %v516, 3
        %v1222 = vor.u32 %v1220, %v1221
        %v1223 = vsel %vm1172, %v1218, %v1222
        %v1224 = vrot.slane %v528, 2
        %v1225 = vrot.slane %v524, 3
        %v1226 = vor.u32 %v1224, %v1225
        %v1227 = vsel %vm1172, %v1222, %v1226
        %v1228 = vrot.slane %v536, 2
        %v1229 = vrot.slane %v532, 3
        %v1230 = vor.u32 %v1228, %v1229
        %v1231 = vsel %vm1172, %v1226, %v1230
        %v1232 = vrot.slane %v544, 2
        %v1233 = vrot.slane %v540, 3
        %v1234 = vor.u32 %v1232, %v1233
        %v1235 = vsel %vm1172, %v1230, %v1234
        %v1236 = vrot.slane %v888, 2
        %v1237 = vrot.slane %v891, 3
        %v1238 = vor.u32 %v1236, %v1237
        %v1239 = vsel %vm1172, %v1234, %v1238
        %v1241 = vshrl.u32 %v1093, 16
        %v1243 = vrot.slane %v1241, 2
        %v1244 = vshll.u32 %v1093, 16
        %v1246 = vrot.slane %v1244, 3
        %v1247 = vor.u32 %v1243, %v1246
        %v1248 = vsel %vm1172, %v1238, %v1247
        %v1250 = vshrl.u32 %v1094, 16
        %v1252 = vrot.slane %v1250, 2
        %v1253 = vshll.u32 %v1094, 16
        %v1255 = vrot.slane %v1253, 3
        %v1256 = vor.u32 %v1252, %v1255
        %v1257 = vsel %vm1172, %v1247, %v1256
        %1258 = vrot.lane.b32.xlu0 %v1179, 28
        %v1259 = vpop.permute.xlu0 %1258
        %1260 = vrot.lane.b32.xlu0 %v1183, 28
        %v1261 = vpop.permute.xlu0 %1260
        %1262 = vrot.lane.b32.xlu0 %v1187, 28
        %v1263 = vpop.permute.xlu0 %1262
        %1264 = vrot.lane.b32.xlu0 %v1191, 28
        %v1265 = vpop.permute.xlu0 %1264
        %1266 = vrot.lane.b32.xlu0 %v1195, 28
        %v1267 = vpop.permute.xlu0 %1266
        %1268 = vrot.lane.b32.xlu0 %v1199, 28
        %v1269 = vpop.permute.xlu0 %1268
        %1270 = vrot.lane.b32.xlu0 %v1203, 28
        %v1271 = vpop.permute.xlu0 %1270
        %1272 = vrot.lane.b32.xlu0 %v1207, 28
        %v1273 = vpop.permute.xlu0 %1272
        %1274 = vrot.lane.b32.xlu0 %v1211, 28
        %v1275 = vpop.permute.xlu0 %1274
        %1276 = vrot.lane.b32.xlu0 %v1215, 28
        %v1277 = vpop.permute.xlu0 %1276
        %1278 = vrot.lane.b32.xlu0 %v1219, 28
        %v1279 = vpop.permute.xlu0 %1278
        %1280 = vrot.lane.b32.xlu0 %v1223, 28
        %v1281 = vpop.permute.xlu0 %1280
        %1282 = vrot.lane.b32.xlu0 %v1227, 28
        %v1283 = vpop.permute.xlu0 %1282
        %1284 = vrot.lane.b32.xlu0 %v1231, 28
        %v1285 = vpop.permute.xlu0 %1284
        %1286 = vrot.lane.b32.xlu0 %v1235, 28
        %v1287 = vpop.permute.xlu0 %1286
        %1288 = vrot.lane.b32.xlu0 %v1239, 28
        %v1289 = vpop.permute.xlu0 %1288
        %1290 = vrot.lane.b32.xlu0 %v1248, 28
        %v1291 = vpop.permute.xlu0 %1290
        %1292 = vrot.lane.b32.xlu0 %v1257, 28
        %v1293 = vpop.permute.xlu0 %1292
        %vm1312 = vcmask 261344
        %1313 = vst.msk [vmem:[#allocation2] sm:$0xff] %vm1312, %v1259
        %1314 = vst.msk [vmem:[#allocation2 + $0x8] sm:$0xff] %vm1312, %v1261
        %1315 = vst.msk [vmem:[#allocation2 + $0x10] sm:$0xff] %vm1312, %v1263
        %1316 = vst.msk [vmem:[#allocation2 + $0x18] sm:$0xff] %vm1312, %v1265
        %1317 = vst.msk [vmem:[#allocation2 + $0x20] sm:$0xff] %vm1312, %v1267
        %1318 = vst.msk [vmem:[#allocation2 + $0x28] sm:$0xff] %vm1312, %v1269
        %1319 = vst.msk [vmem:[#allocation2 + $0x30] sm:$0xff] %vm1312, %v1271
        %1320 = vst.msk [vmem:[#allocation2 + $0x38] sm:$0xff] %vm1312, %v1273
        %1321 = vst.msk [vmem:[#allocation2 + $0x40] sm:$0xff] %vm1312, %v1275
        %1322 = vst.msk [vmem:[#allocation2 + $0x48] sm:$0xff] %vm1312, %v1277
        %1323 = vst.msk [vmem:[#allocation2 + $0x50] sm:$0xff] %vm1312, %v1279
        %1324 = vst.msk [vmem:[#allocation2 + $0x58] sm:$0xff] %vm1312, %v1281
        %1325 = vst.msk [vmem:[#allocation2 + $0x60] sm:$0xff] %vm1312, %v1283
        %1326 = vst.msk [vmem:[#allocation2 + $0x68] sm:$0xff] %vm1312, %v1285
        %1327 = vst.msk [vmem:[#allocation2 + $0x70] sm:$0xff] %vm1312, %v1287
        %1328 = vst.msk [vmem:[#allocation2 + $0x78] sm:$0xff] %vm1312, %v1289
        %1329 = vst.msk [vmem:[#allocation2 + $0x80] sm:$0xff] %vm1312, %v1291
        %1330 = vst.msk [vmem:[#allocation2 + $0x88] sm:$0xff] %vm1312, %v1293
        %vm1331 = vcmask 1044480
        %v1332 = vrot.slane %v347, 3
        %v1333 = vrot.slane %v348, 3
        %v1334 = vsel %vm1331, %v1332, %v1333
        %v1335 = vrot.slane %v349, 3
        %v1336 = vsel %vm1331, %v1333, %v1335
        %v1337 = vrot.slane %v350, 3
        %v1338 = vsel %vm1331, %v1335, %v1337
        %v1339 = vrot.slane %v351, 3
        %v1340 = vsel %vm1331, %v1337, %v1339
        %v1341 = vrot.slane %v352, 3
        %v1342 = vsel %vm1331, %v1339, %v1341
        %v1343 = vrot.slane %v353, 3
        %v1344 = vsel %vm1331, %v1341, %v1343
        %v1345 = vrot.slane %v354, 3
        %v1346 = vsel %vm1331, %v1343, %v1345
        %v1347 = vrot.slane %v355, 3
        %v1348 = vsel %vm1331, %v1345, %v1347
        %v1349 = vrot.slane %v356, 3
        %v1350 = vsel %vm1331, %v1347, %v1349
        %v1351 = vrot.slane %v357, 3
        %v1352 = vsel %vm1331, %v1349, %v1351
        %v1353 = vrot.slane %v358, 3
        %v1354 = vsel %vm1331, %v1351, %v1353
        %v1355 = vrot.slane %v359, 3
        %v1356 = vsel %vm1331, %v1353, %v1355
        %v1357 = vrot.slane %v360, 3
        %v1358 = vsel %vm1331, %v1355, %v1357
        %v1359 = vrot.slane %v361, 3
        %v1360 = vsel %vm1331, %v1357, %v1359
        %v1361 = vrot.slane %v362, 3
        %v1362 = vsel %vm1331, %v1359, %v1361
        %v1363 = vrot.slane %v740, 3
        %v1364 = vsel %vm1331, %v1361, %v1363
        %v1365 = vrot.slane %v1093, 3
        %v1366 = vsel %vm1331, %v1363, %v1365
        %v1367 = vrot.slane %v1094, 3
        %v1368 = vsel %vm1331, %v1365, %v1367
        %1369 = vrot.lane.b32.xlu0 %v1334, 32
        %v1370 = vpop.permute.xlu0 %1369
        %1371 = vrot.lane.b32.xlu0 %v1336, 32
        %v1372 = vpop.permute.xlu0 %1371
        %1373 = vrot.lane.b32.xlu0 %v1338, 32
        %v1374 = vpop.permute.xlu0 %1373
        %1375 = vrot.lane.b32.xlu0 %v1340, 32
        %v1376 = vpop.permute.xlu0 %1375
        %1377 = vrot.lane.b32.xlu0 %v1342, 32
        %v1378 = vpop.permute.xlu0 %1377
        %1379 = vrot.lane.b32.xlu0 %v1344, 32
        %v1380 = vpop.permute.xlu0 %1379
        %1381 = vrot.lane.b32.xlu0 %v1346, 32
        %v1382 = vpop.permute.xlu0 %1381
        %1383 = vrot.lane.b32.xlu0 %v1348, 32
        %v1384 = vpop.permute.xlu0 %1383
        %1385 = vrot.lane.b32.xlu0 %v1350, 32
        %v1386 = vpop.permute.xlu0 %1385
        %1387 = vrot.lane.b32.xlu0 %v1352, 32
        %v1388 = vpop.permute.xlu0 %1387
        %1389 = vrot.lane.b32.xlu0 %v1354, 32
        %v1390 = vpop.permute.xlu0 %1389
        %1391 = vrot.lane.b32.xlu0 %v1356, 32
        %v1392 = vpop.permute.xlu0 %1391
        %1393 = vrot.lane.b32.xlu0 %v1358, 32
        %v1394 = vpop.permute.xlu0 %1393
        %1395 = vrot.lane.b32.xlu0 %v1360, 32
        %v1396 = vpop.permute.xlu0 %1395
        %1397 = vrot.lane.b32.xlu0 %v1362, 32
        %v1398 = vpop.permute.xlu0 %1397
        %1399 = vrot.lane.b32.xlu0 %v1364, 32
        %v1400 = vpop.permute.xlu0 %1399
        %1401 = vrot.lane.b32.xlu0 %v1366, 32
        %v1402 = vpop.permute.xlu0 %1401
        %1403 = vrot.lane.b32.xlu0 %v1368, 32
        %v1404 = vpop.permute.xlu0 %1403
        %vm1423 = vcmask 294144
        %1424 = vst.msk [vmem:[#allocation2] sm:$0xff] %vm1423, %v1370
        %1425 = vst.msk [vmem:[#allocation2 + $0x8] sm:$0xff] %vm1423, %v1372
        %1426 = vst.msk [vmem:[#allocation2 + $0x10] sm:$0xff] %vm1423, %v1374
        %1427 = vst.msk [vmem:[#allocation2 + $0x18] sm:$0xff] %vm1423, %v1376
        %1428 = vst.msk [vmem:[#allocation2 + $0x20] sm:$0xff] %vm1423, %v1378
        %1429 = vst.msk [vmem:[#allocation2 + $0x28] sm:$0xff] %vm1423, %v1380
        %1430 = vst.msk [vmem:[#allocation2 + $0x30] sm:$0xff] %vm1423, %v1382
        %1431 = vst.msk [vmem:[#allocation2 + $0x38] sm:$0xff] %vm1423, %v1384
        %1432 = vst.msk [vmem:[#allocation2 + $0x40] sm:$0xff] %vm1423, %v1386
        %1433 = vst.msk [vmem:[#allocation2 + $0x48] sm:$0xff] %vm1423, %v1388
        %1434 = vst.msk [vmem:[#allocation2 + $0x50] sm:$0xff] %vm1423, %v1390
        %1435 = vst.msk [vmem:[#allocation2 + $0x58] sm:$0xff] %vm1423, %v1392
        %1436 = vst.msk [vmem:[#allocation2 + $0x60] sm:$0xff] %vm1423, %v1394
        %1437 = vst.msk [vmem:[#allocation2 + $0x68] sm:$0xff] %vm1423, %v1396
        %1438 = vst.msk [vmem:[#allocation2 + $0x70] sm:$0xff] %vm1423, %v1398
        %1439 = vst.msk [vmem:[#allocation2 + $0x78] sm:$0xff] %vm1423, %v1400
        %1440 = vst.msk [vmem:[#allocation2 + $0x80] sm:$0xff] %vm1423, %v1402
        %1441 = vst.msk [vmem:[#allocation2 + $0x88] sm:$0xff] %vm1423, %v1404
        %v1442 = vld [vmem:[#allocation2] sm:$0xff]
        %v1443 = vld [vmem:[#allocation2 + $0x8] sm:$0xff]
        %v1444 = vld [vmem:[#allocation2 + $0x10] sm:$0xff]
        %v1445 = vld [vmem:[#allocation2 + $0x18] sm:$0xff]
        %v1446 = vld [vmem:[#allocation2 + $0x20] sm:$0xff]
        %v1447 = vld [vmem:[#allocation2 + $0x28] sm:$0xff]
        %v1448 = vld [vmem:[#allocation2 + $0x30] sm:$0xff]
        %v1449 = vld [vmem:[#allocation2 + $0x38] sm:$0xff]
        %v1450 = vld [vmem:[#allocation2 + $0x40] sm:$0xff]
        %v1451 = vld [vmem:[#allocation2 + $0x48] sm:$0xff]
        %v1452 = vld [vmem:[#allocation2 + $0x50] sm:$0xff]
        %v1453 = vld [vmem:[#allocation2 + $0x58] sm:$0xff]
        %v1454 = vld [vmem:[#allocation2 + $0x60] sm:$0xff]
        %v1455 = vld [vmem:[#allocation2 + $0x68] sm:$0xff]
        %v1456 = vld [vmem:[#allocation2 + $0x70] sm:$0xff]
        %v1457 = vld [vmem:[#allocation2 + $0x78] sm:$0xff]
        %v1458 = vld [vmem:[#allocation2 + $0x80] sm:$0xff]
        %v1459 = vld [vmem:[#allocation2 + $0x88] sm:$0xff]
        %v1460 = vld [vmem:[#allocation6] sm:$0xf]
        %v1461 = vld [vmem:[#allocation6 + $0x4] sm:$0xf]
        %v1462 = vld [vmem:[#allocation6 + $0x8] sm:$0xf]
        %v1463 = vld [vmem:[#allocation6 + $0xc] sm:$0xf]
        %v1464 = vld [vmem:[#allocation6 + $0x10] sm:$0x3]
        %v1465 = vld [vmem:[#allocation8] sm:$0x1]
        %v1467 = vlaneseq
        %v1468 = vshrl.u32 %v1467, 7
        %v1469 = vsub.s32 0, %v1468
        %v1470 = vrot.slane %v1465, %v1469
        %v1477 = vunpack.c.l.b16 %v1460
        %v1478 = vunpack.c.l.b16 %v1461
        %v1479 = vunpack.c.l.b16 %v1462
        %v1480 = vunpack.c.l.b16 %v1463
        %v1481 = vunpack.c.l.b16 %v1464
        %v1482 = vpack.c.b16 %v1478, %v1477
        %v1483 = vpack.c.b16 %v1480, %v1479
        %v1484 = vpack.c.b16 %v1481, %v1481
        %vm1487 = vcmask 293888
        %v1489 = vsel %vm1487, %v1442, 0
        %v1492 = vsel %vm1487, %v1443, 0
        %v1495 = vsel %vm1487, %v1444, 0
        %v1498 = vsel %vm1487, %v1445, 0
        %v1501 = vsel %vm1487, %v1446, 0
        %v1504 = vsel %vm1487, %v1447, 0
        %v1507 = vsel %vm1487, %v1448, 0
        %v1510 = vsel %vm1487, %v1449, 0
        %v1513 = vsel %vm1487, %v1450, 0
        %v1516 = vsel %vm1487, %v1451, 0
        %v1519 = vsel %vm1487, %v1452, 0
        %v1522 = vsel %vm1487, %v1453, 0
        %v1525 = vsel %vm1487, %v1454, 0
        %v1528 = vsel %vm1487, %v1455, 0
        %v1531 = vsel %vm1487, %v1456, 0
        %v1534 = vsel %vm1487, %v1457, 0
        %v1537 = vsel %vm1487, %v1458, 0
        %v1540 = vsel %vm1487, %v1459, 0
        %vm1542 = vcmask 1041408
        %v1544 = vsel %vm1542, %v1484, 0
        %1546 = vmatprep.subr.bf16.mxu0 0
        %1547 = vmatpush1.bf16.msra.mxu0 %v1482
        %1548 = vmatprep.subr.bf16.mxu0 0
        %1549 = vmatpush1.bf16.msra.mxu0 %v1483
        %1550 = vmatprep.subr.bf16.mxu0 0
        %1551 = vmatpush1.bf16.msra.mxu0 %v1544
        %1552 = vmatprep.subr.bf16.mxu0 0
        %1553 = vmatpush1.bf16.msra.mxu0 0
        %1554 = vmatprep.subr.bf16.mxu0 0
        %1555 = vmatpush1.bf16.msra.mxu0 0
        %1556 = vmatprep.subr.bf16.mxu0 0
        %1557 = vmatpush1.bf16.msra.mxu0 0
        %1558 = vmatprep.subr.bf16.mxu0 0
        %1559 = vmatpush1.bf16.msra.mxu0 0
        %1560 = vmatprep.subr.bf16.mxu0 0
        %1561 = vmatpush1.bf16.msra.mxu0 0
        %1562 = vmatprep.subr.bf16.mxu0 0
        %1563 = vmatpush1.bf16.msra.mxu0 0
        %1564 = vmatprep.subr.bf16.mxu0 0
        %1565 = vmatpush1.bf16.msra.mxu0 0
        %1566 = vmatprep.subr.bf16.mxu0 0
        %1567 = vmatpush1.bf16.msra.mxu0 0
        %1568 = vmatprep.subr.bf16.mxu0 0
        %1569 = vmatpush1.bf16.msra.mxu0 0
        %1570 = vmatprep.subr.bf16.mxu0 0
        %1571 = vmatpush1.bf16.msra.mxu0 0
        %1572 = vmatprep.subr.bf16.mxu0 0
        %1573 = vmatpush1.bf16.msra.mxu0 0
        %1574 = vmatprep.subr.bf16.mxu0 0
        %1575 = vmatpush1.bf16.msra.mxu0 0
        %1576 = vmatprep.subr.bf16.mxu0 0
        %1577 = vmatpush1.bf16.msra.mxu0 0
        %1578 = vmatprep.mubr.bf16.mxu0 0
        %1579 = vmatmul.mubr.bf16.gmra.mrb[0].mxu0 %v1489
        %v1580 = vpop.f32.mrb[0].mxu0
        %v1581 = vadd.f32 %v1470, %v1580
        %v1582 = vpop.f32.mrb[0].mxu0
        %v1583 = vpop.f32.mrb[0].mxu0
        %v1584 = vadd.f32 %v1470, %v1583
        %v1585 = vpop.f32.mrb[0].mxu0
        %1586 = vmatprep.mubr.bf16.mxu0 0
        %1587 = vmatmul.mubr.bf16.gmra.mrb[0].mxu0 %v1492
        %v1588 = vpop.f32.mrb[0].mxu0
        %v1589 = vadd.f32 %v1470, %v1588
        %v1590 = vpop.f32.mrb[0].mxu0
        %v1591 = vpop.f32.mrb[0].mxu0
        %v1592 = vadd.f32 %v1470, %v1591
        %v1593 = vpop.f32.mrb[0].mxu0
        %1594 = vmatprep.mubr.bf16.mxu0 0
        %1595 = vmatmul.mubr.bf16.gmra.mrb[0].mxu0 %v1495
        %v1596 = vpop.f32.mrb[0].mxu0
        %v1597 = vadd.f32 %v1470, %v1596
        %v1598 = vpop.f32.mrb[0].mxu0
        %v1599 = vpop.f32.mrb[0].mxu0
        %v1600 = vadd.f32 %v1470, %v1599
        %v1601 = vpop.f32.mrb[0].mxu0
        %1602 = vmatprep.mubr.bf16.mxu0 0
        %1603 = vmatmul.mubr.bf16.gmra.mrb[0].mxu0 %v1498
        %v1604 = vpop.f32.mrb[0].mxu0
        %v1605 = vadd.f32 %v1470, %v1604
        %v1606 = vpop.f32.mrb[0].mxu0
        %v1607 = vpop.f32.mrb[0].mxu0
        %v1608 = vadd.f32 %v1470, %v1607
        %v1609 = vpop.f32.mrb[0].mxu0
        %1610 = vmatprep.mubr.bf16.mxu0 0
        %1611 = vmatmul.mubr.bf16.gmra.mrb[0].mxu0 %v1501
        %v1612 = vpop.f32.mrb[0].mxu0
        %v1613 = vadd.f32 %v1470, %v1612
        %v1614 = vpop.f32.mrb[0].mxu0
        %v1615 = vpop.f32.mrb[0].mxu0
        %v1616 = vadd.f32 %v1470, %v1615
        %v1617 = vpop.f32.mrb[0].mxu0
        %1618 = vmatprep.mubr.bf16.mxu0 0
        %1619 = vmatmul.mubr.bf16.gmra.mrb[0].mxu0 %v1504
        %v1620 = vpop.f32.mrb[0].mxu0
        %v1621 = vadd.f32 %v1470, %v1620
        %v1622 = vpop.f32.mrb[0].mxu0
        %v1623 = vpop.f32.mrb[0].mxu0
        %v1624 = vadd.f32 %v1470, %v1623
        %v1625 = vpop.f32.mrb[0].mxu0
        %1626 = vmatprep.mubr.bf16.mxu0 0
        %1627 = vmatmul.mubr.bf16.gmra.mrb[0].mxu0 %v1507
        %v1628 = vpop.f32.mrb[0].mxu0
        %v1629 = vadd.f32 %v1470, %v1628
        %v1630 = vpop.f32.mrb[0].mxu0
        %v1631 = vpop.f32.mrb[0].mxu0
        %v1632 = vadd.f32 %v1470, %v1631
        %v1633 = vpop.f32.mrb[0].mxu0
        %1634 = vmatprep.mubr.bf16.mxu0 0
        %1635 = vmatmul.mubr.bf16.gmra.mrb[0].mxu0 %v1510
        %v1636 = vpop.f32.mrb[0].mxu0
        %v1637 = vadd.f32 %v1470, %v1636
        %v1638 = vpop.f32.mrb[0].mxu0
        %v1639 = vpop.f32.mrb[0].mxu0
        %v1640 = vadd.f32 %v1470, %v1639
        %v1641 = vpop.f32.mrb[0].mxu0
        %1642 = vmatprep.mubr.bf16.mxu0 0
        %1643 = vmatmul.mubr.bf16.gmra.mrb[0].mxu0 %v1513
        %v1644 = vpop.f32.mrb[0].mxu0
        %v1645 = vadd.f32 %v1470, %v1644
        %v1646 = vpop.f32.mrb[0].mxu0
        %v1647 = vpop.f32.mrb[0].mxu0
        %v1648 = vadd.f32 %v1470, %v1647
        %v1649 = vpop.f32.mrb[0].mxu0
        %1650 = vmatprep.mubr.bf16.mxu0 0
        %1651 = vmatmul.mubr.bf16.gmra.mrb[0].mxu0 %v1516
        %v1652 = vpop.f32.mrb[0].mxu0
        %v1653 = vadd.f32 %v1470, %v1652
        %v1654 = vpop.f32.mrb[0].mxu0
        %v1655 = vpop.f32.mrb[0].mxu0
        %v1656 = vadd.f32 %v1470, %v1655
        %v1657 = vpop.f32.mrb[0].mxu0
        %1658 = vmatprep.mubr.bf16.mxu0 0
        %1659 = vmatmul.mubr.bf16.gmra.mrb[0].mxu0 %v1519
        %v1660 = vpop.f32.mrb[0].mxu0
        %v1661 = vadd.f32 %v1470, %v1660
        %v1662 = vpop.f32.mrb[0].mxu0
        %v1663 = vpop.f32.mrb[0].mxu0
        %v1664 = vadd.f32 %v1470, %v1663
        %v1665 = vpop.f32.mrb[0].mxu0
        %1666 = vmatprep.mubr.bf16.mxu0 0
        %1667 = vmatmul.mubr.bf16.gmra.mrb[0].mxu0 %v1522
        %v1668 = vpop.f32.mrb[0].mxu0
        %v1669 = vadd.f32 %v1470, %v1668
        %v1670 = vpop.f32.mrb[0].mxu0
        %v1671 = vpop.f32.mrb[0].mxu0
        %v1672 = vadd.f32 %v1470, %v1671
        %v1673 = vpop.f32.mrb[0].mxu0
        %1674 = vmatprep.mubr.bf16.mxu0 0
        %1675 = vmatmul.mubr.bf16.gmra.mrb[0].mxu0 %v1525
        %v1676 = vpop.f32.mrb[0].mxu0
        %v1677 = vadd.f32 %v1470, %v1676
        %v1678 = vpop.f32.mrb[0].mxu0
        %v1679 = vpop.f32.mrb[0].mxu0
        %v1680 = vadd.f32 %v1470, %v1679
        %v1681 = vpop.f32.mrb[0].mxu0
        %1682 = vmatprep.mubr.bf16.mxu0 0
        %1683 = vmatmul.mubr.bf16.gmra.mrb[0].mxu0 %v1528
        %v1684 = vpop.f32.mrb[0].mxu0
        %v1685 = vadd.f32 %v1470, %v1684
        %v1686 = vpop.f32.mrb[0].mxu0
        %v1687 = vpop.f32.mrb[0].mxu0
        %v1688 = vadd.f32 %v1470, %v1687
        %v1689 = vpop.f32.mrb[0].mxu0
        %1690 = vmatprep.mubr.bf16.mxu0 0
        %1691 = vmatmul.mubr.bf16.gmra.mrb[0].mxu0 %v1531
        %v1692 = vpop.f32.mrb[0].mxu0
        %v1693 = vadd.f32 %v1470, %v1692
        %v1694 = vpop.f32.mrb[0].mxu0
        %v1695 = vpop.f32.mrb[0].mxu0
        %v1696 = vadd.f32 %v1470, %v1695
        %v1697 = vpop.f32.mrb[0].mxu0
        %1698 = vmatprep.mubr.bf16.mxu0 0
        %1699 = vmatmul.mubr.bf16.gmra.mrb[0].mxu0 %v1534
        %v1700 = vpop.f32.mrb[0].mxu0
        %v1701 = vadd.f32 %v1470, %v1700
        %v1702 = vpop.f32.mrb[0].mxu0
        %v1703 = vpop.f32.mrb[0].mxu0
        %v1704 = vadd.f32 %v1470, %v1703
        %v1705 = vpop.f32.mrb[0].mxu0
        %1706 = vmatprep.mubr.bf16.mxu0 0
        %1707 = vmatmul.mubr.bf16.gmra.mrb[0].mxu0 %v1537
        %v1708 = vpop.f32.mrb[0].mxu0
        %v1709 = vadd.f32 %v1470, %v1708
        %v1710 = vpop.f32.mrb[0].mxu0
        %v1711 = vpop.f32.mrb[0].mxu0
        %v1712 = vadd.f32 %v1470, %v1711
        %v1713 = vpop.f32.mrb[0].mxu0
        %1714 = vmatprep.mubr.bf16.mxu0 0
        %1715 = vmatmul.mubr.bf16.gmra.mrb[0].mxu0 %v1540
        %v1716 = vpop.f32.mrb[0].mxu0
        %v1717 = vadd.f32 %v1470, %v1716
        %v1718 = vpop.f32.mrb[0].mxu0
        %v1719 = vpop.f32.mrb[0].mxu0
        %v1720 = vadd.f32 %v1470, %v1719
        %v1721 = vpop.f32.mrb[0].mxu0
        %1722 = vdwg.mxu0
        %v1723 = vpack.c.bf16 %v1584, %v1581
        %v1724 = vpack.c.bf16 %v1592, %v1589
        %v1725 = vpack.c.bf16 %v1600, %v1597
        %v1726 = vpack.c.bf16 %v1608, %v1605
        %v1727 = vpack.c.bf16 %v1616, %v1613
        %v1728 = vpack.c.bf16 %v1624, %v1621
        %v1729 = vpack.c.bf16 %v1632, %v1629
        %v1730 = vpack.c.bf16 %v1640, %v1637
        %v1731 = vpack.c.bf16 %v1648, %v1645
        %v1732 = vpack.c.bf16 %v1656, %v1653
        %v1733 = vpack.c.bf16 %v1664, %v1661
        %v1734 = vpack.c.bf16 %v1672, %v1669
        %v1735 = vpack.c.bf16 %v1680, %v1677
        %v1736 = vpack.c.bf16 %v1688, %v1685
        %v1737 = vpack.c.bf16 %v1696, %v1693
        %v1738 = vpack.c.bf16 %v1704, %v1701
        %v1739 = vpack.c.bf16 %v1712, %v1709
        %v1740 = vpack.c.bf16 %v1720, %v1717
        %v1759 = vunpack.c.l.b16 %v1723
        %v1760 = vunpack.c.h.b16 %v1723
        %v1761 = vunpack.c.l.b16 %v1724
        %v1762 = vunpack.c.h.b16 %v1724
        %v1763 = vunpack.c.l.b16 %v1725
        %v1764 = vunpack.c.h.b16 %v1725
        %v1765 = vunpack.c.l.b16 %v1726
        %v1766 = vunpack.c.h.b16 %v1726
        %v1767 = vunpack.c.l.b16 %v1727
        %v1768 = vunpack.c.h.b16 %v1727
        %v1769 = vunpack.c.l.b16 %v1728
        %v1770 = vunpack.c.h.b16 %v1728
        %v1771 = vunpack.c.l.b16 %v1729
        %v1772 = vunpack.c.h.b16 %v1729
        %v1773 = vunpack.c.l.b16 %v1730
        %v1774 = vunpack.c.h.b16 %v1730
        %v1775 = vunpack.c.l.b16 %v1731
        %v1776 = vunpack.c.h.b16 %v1731
        %v1777 = vunpack.c.l.b16 %v1732
        %v1778 = vunpack.c.h.b16 %v1732
        %v1779 = vunpack.c.l.b16 %v1733
        %v1780 = vunpack.c.h.b16 %v1733
        %v1781 = vunpack.c.l.b16 %v1734
        %v1782 = vunpack.c.h.b16 %v1734
        %v1783 = vunpack.c.l.b16 %v1735
        %v1784 = vunpack.c.h.b16 %v1735
        %v1785 = vunpack.c.l.b16 %v1736
        %v1786 = vunpack.c.h.b16 %v1736
        %v1787 = vunpack.c.l.b16 %v1737
        %v1788 = vunpack.c.h.b16 %v1737
        %v1789 = vunpack.c.l.b16 %v1738
        %v1790 = vunpack.c.h.b16 %v1738
        %v1791 = vunpack.c.l.b16 %v1739
        %v1792 = vunpack.c.h.b16 %v1739
        %v1793 = vunpack.c.l.b16 %v1740
        %v1794 = vunpack.c.h.b16 %v1740
        %v1795 = vpack.c.b16 %v1759, %v1759
        %v1796 = vpack.c.b16 %v1760, %v1760
        %v1797 = vpack.c.b16 %v1761, %v1761
        %v1798 = vpack.c.b16 %v1762, %v1762
        %v1799 = vpack.c.b16 %v1763, %v1763
        %v1800 = vpack.c.b16 %v1764, %v1764
        %v1801 = vpack.c.b16 %v1765, %v1765
        %v1802 = vpack.c.b16 %v1766, %v1766
        %v1803 = vpack.c.b16 %v1767, %v1767
        %v1804 = vpack.c.b16 %v1768, %v1768
        %v1805 = vpack.c.b16 %v1769, %v1769
        %v1806 = vpack.c.b16 %v1770, %v1770
        %v1807 = vpack.c.b16 %v1771, %v1771
        %v1808 = vpack.c.b16 %v1772, %v1772
        %v1809 = vpack.c.b16 %v1773, %v1773
        %v1810 = vpack.c.b16 %v1774, %v1774
        %v1811 = vpack.c.b16 %v1775, %v1775
        %v1812 = vpack.c.b16 %v1776, %v1776
        %v1813 = vpack.c.b16 %v1777, %v1777
        %v1814 = vpack.c.b16 %v1778, %v1778
        %v1815 = vpack.c.b16 %v1779, %v1779
        %v1816 = vpack.c.b16 %v1780, %v1780
        %v1817 = vpack.c.b16 %v1781, %v1781
        %v1818 = vpack.c.b16 %v1782, %v1782
        %v1819 = vpack.c.b16 %v1783, %v1783
        %v1820 = vpack.c.b16 %v1784, %v1784
        %v1821 = vpack.c.b16 %v1785, %v1785
        %v1822 = vpack.c.b16 %v1786, %v1786
        %v1823 = vpack.c.b16 %v1787, %v1787
        %v1824 = vpack.c.b16 %v1788, %v1788
        %v1825 = vpack.c.b16 %v1789, %v1789
        %v1826 = vpack.c.b16 %v1790, %v1790
        %v1827 = vpack.c.b16 %v1791, %v1791
        %v1828 = vpack.c.b16 %v1792, %v1792
        %v1829 = vpack.c.b16 %v1793, %v1793
        %v1830 = vpack.c.b16 %v1794, %v1794
        %1867 = vst [vmem:[%s229] sm:$0xf] %v1795
        %1868 = vst [vmem:[%s229 + $0x4] sm:$0xf] %v1796
        %1869 = vst [vmem:[%s229 + $0x8] sm:$0xf] %v1797
        %1870 = vst [vmem:[%s229 + $0xc] sm:$0xf] %v1798
        %1871 = vst [vmem:[%s229 + $0x10] sm:$0xf] %v1799
        %1872 = vst [vmem:[%s229 + $0x14] sm:$0xf] %v1800
        %1873 = vst [vmem:[%s229 + $0x18] sm:$0xf] %v1801
        %1874 = vst [vmem:[%s229 + $0x1c] sm:$0xf] %v1802
        %1875 = vst [vmem:[%s229 + $0x20] sm:$0xf] %v1803
        %1876 = vst [vmem:[%s229 + $0x24] sm:$0xf] %v1804
        %1877 = vst [vmem:[%s229 + $0x28] sm:$0xf] %v1805
        %1878 = vst [vmem:[%s229 + $0x2c] sm:$0xf] %v1806
        %1879 = vst [vmem:[%s229 + $0x30] sm:$0xf] %v1807
        %1880 = vst [vmem:[%s229 + $0x34] sm:$0xf] %v1808
        %1881 = vst [vmem:[%s229 + $0x38] sm:$0xf] %v1809
        %1882 = vst [vmem:[%s229 + $0x3c] sm:$0xf] %v1810
        %1883 = vst [vmem:[%s229 + $0x40] sm:$0xf] %v1811
        %1884 = vst [vmem:[%s229 + $0x44] sm:$0xf] %v1812
        %1885 = vst [vmem:[%s229 + $0x48] sm:$0xf] %v1813
        %1886 = vst [vmem:[%s229 + $0x4c] sm:$0xf] %v1814
        %1887 = vst [vmem:[%s229 + $0x50] sm:$0xf] %v1815
        %1888 = vst [vmem:[%s229 + $0x54] sm:$0xf] %v1816
        %1889 = vst [vmem:[%s229 + $0x58] sm:$0xf] %v1817
        %1890 = vst [vmem:[%s229 + $0x5c] sm:$0xf] %v1818
        %1891 = vst [vmem:[%s229 + $0x60] sm:$0xf] %v1819
        %1892 = vst [vmem:[%s229 + $0x64] sm:$0xf] %v1820
        %1893 = vst [vmem:[%s229 + $0x68] sm:$0xf] %v1821
        %1894 = vst [vmem:[%s229 + $0x6c] sm:$0xf] %v1822
        %1895 = vst [vmem:[%s229 + $0x70] sm:$0xf] %v1823
        %1896 = vst [vmem:[%s229 + $0x74] sm:$0xf] %v1824
        %1897 = vst [vmem:[%s229 + $0x78] sm:$0xf] %v1825
        %1898 = vst [vmem:[%s229 + $0x7c] sm:$0xf] %v1826
        %1899 = vst [vmem:[%s229 + $0x80] sm:$0xf] %v1827
        %1900 = vst [vmem:[%s229 + $0x84] sm:$0xf] %v1828
        %1901 = vst [vmem:[%s229 + $0x88] sm:$0xf] %v1829
        %1902 = vst [vmem:[%s229 + $0x8c] sm:$0xf] %v1830
        %s1903 = sand.u32 %s111, 1
        %s1904 = scalar_lea.sflag [#allocation5], %s1903
        %s1905 = sand.u32 %s111, 1
        %s1906 = smul.addr %s1905, 144
        %s1907 = scalar_lea.vmem [#allocation9], %s1906
        // Predicated region
        $region45: #{tpu_custom_call.1} parent=31 // pred_check
          %p1908 = pneg %p121
        $region46: #{tpu_custom_call.1} parent=31 // pred_check_branch
          %1910 = sbr.rel (%p1908) target = $region48
        $region47: #{tpu_custom_call.1} parent=31 // pred_region
          %s1911 = smul.u32 36, %s26
          %s1913 = ssub.s32 2304, 2304
          %1914 = vsyncadd %s1904, %s1913
          %s1915 = smul.addr %s25, 36
          %s1916 = sadd.s32 %s1911, %s1915
          %s1917 = smul.addr %s1916, 64
          %s1918 = scalar_lea.hbm %s3, %s1917
          %s1919 = sshll.u32 %s1907, 4
          %s1920 = int_to_ptr.vmem [resolvable:$true] %s1919
          %1925 = dma.vmem_to_hbm [thread:$0]  %s1920, 2304, %s1918, %s1904, 64, 64, 4
        $region48: #{tpu_custom_call.1} parent=31 // pred_fallthru
          _
      $region32: #{tpu_custom_call.1} parent=5 // pred_fallthru
        _
      %p1926 = scmp.le.s32.totalorder 2, %s16
      // Predicated region
      $region49: #{tpu_custom_call.1} parent=5 // pred_check
        %p1927 = pneg %p1926
      $region50: #{tpu_custom_call.1} parent=5 // pred_check_branch
        %1929 = sbr.rel (%p1927) target = $region52
      $region51: #{tpu_custom_call.1} parent=5 // pred_region
        %s1930 = ssub.s32 %s16, 2
        // Predicated region
        $region53: #{tpu_custom_call.1} parent=51 // pred_check
          %p1931 = pneg %p127
        $region54: #{tpu_custom_call.1} parent=51 // pred_check_branch
          %1933 = sbr.rel (%p1931) target = $region56
        $region55: #{tpu_custom_call.1} parent=51 // pred_region
          %s1934 = sand.u32 %s112, 1
          %s1935 = scalar_lea.sflag [#allocation5], %s1934
          %s1936 = sand.u32 %s112, 1
          %s1937 = smul.addr %s1936, 144
          %s1938 = scalar_lea.vmem [#allocation9], %s1937
          %1939 = dma.done %s1935, 2304
        $region56: #{tpu_custom_call.1} parent=51 // pred_fallthru
          _
      $region52: #{tpu_custom_call.1} parent=5 // pred_fallthru
        _
    $region6: #{tpu_custom_call.1} parent=1 // loop_footer
      %s20 = sadd.s32 1, %s16
    $region7: #{tpu_custom_call.1} parent=1 // loop_footer_branch
      %15 = sbr.rel target = $region3
    $region8: #{tpu_custom_call.1} parent=1 // loop_exit
      _
    %1940 = vsyncpa [#allocation4], 1
    %s1941 = scalar_lea.sflag [#allocation4], 1
    %1942 = vsyncpa %s1941, 1
    %1943 = vsyncpa [#allocation7], 1
    %1944 = vsyncpa [#allocation5], 1
    %s1945 = scalar_lea.sflag [#allocation5], 1
    %1946 = vsyncpa %s1945, 1

</llo_original>
